<compile_context>
chip_gen: v6e
topology: v6e:2x2x1
jax: 0.10.0
libtpu: 0.0.40
codegen_flags: <defaults>
</compile_context>

<pallas_src>
import functools

import jax
import jax.numpy as jnp
from jax.experimental import pallas as pl
from jax.experimental.pallas import tpu as pltpu

# Smallest normal f32; rsq below this would make 1/rsq overflow / misbehave.
_TINY = float(jnp.finfo(jnp.float32).tiny)


def _fast_recip(x):
    """EUP approximate reciprocal + one Newton-Raphson step (~f32 accurate)."""
    r = pl.reciprocal(x, approx=True)
    return r * (2.0 - x * r)


def _choose_m_tiling(M, Bn, vmem_budget_bytes=8 << 20, n_temps=6):
    """Pick (Mpad, TM) for the flattened s*s axis.

    TM is the largest lane-aligned tile whose ~n_temps (Bn, TM) f32
    temporaries fit the VMEM budget, capped so the grid has >= 2 steps
    (megacore on v7x).  Prefers a divisor of the lane-aligned M (no ragged
    tail); otherwise pads M up to a multiple of TM (host crops the result).
    """
    lane = 128
    m_aligned = ((M + lane - 1) // lane) * lane
    cap = (vmem_budget_bytes // (n_temps * Bn * 4)) // lane * lane
    cap = max(cap, lane)
    if m_aligned <= lane:
        return m_aligned, m_aligned                 # tiny problem: one tile
    # >= 2 grid steps so ("parallel",) can shard across v7x's two TensorCores.
    cap = min(cap, ((m_aligned // 2 + lane - 1) // lane) * lane)
    for t in range(cap, lane - 1, -lane):
        if m_aligned % t == 0:
            if 2 * t >= cap:                        # close enough to budget cap
                return m_aligned, t
            break                                   # only tiny divisors exist
    # Ragged fallback: fixed tile, pad M up, crop on the host.
    t = cap
    return ((M + t - 1) // t) * t, t


def _idw_kernel(srcx_ref, srcy_ref, a_ref, out_ref, *, B, s, TM):
    # srcx_ref / srcy_ref : (B*n, 1)   control-point coords, sublane columns
    # a_ref               : (R,  B*n)  reduction matrix (see wrapper)
    # out_ref             : (2B, TM)   rows interleaved: 2b = x_b, 2b+1 = y_b
    nb = 2 * B

    # --- sampling grid for this M-tile, generated in-kernel (no gs DMA) -----
    m0 = pl.program_id(0) * TM
    col = (m0 + jax.lax.broadcasted_iota(jnp.int32, (1, TM), 1)).astype(jnp.float32)
    # row / col of the s x s grid; float floor-division is exact for s <= 4096.
    # TODO(synk): switch to integer iota arithmetic if s > 4096 is ever needed.
    gr = jnp.floor(col / float(s))
    gc = col - gr * float(s)
    step = 2.0 / (s - 1.0)
    gx = gc * step - 1.0                              # (1, TM)
    gy = gr * step - 1.0                              # (1, TM)

    # --- squared distances for every (batch, control point) row --------------
    dx = srcx_ref[...] - gx                           # (B*n, TM)
    dy = srcy_ref[...] - gy
    rsq = dx * dx + dy * dy

    A = a_ref[...]
    min_rsq = jnp.min(rsq)                            # scalar gate for fix-up

    # --- common path: no coincidence anywhere in this tile -------------------
    @pl.when(min_rsq > _TINY)
    def _():
        w = _fast_recip(rsq)                          # (B*n, TM)
        # Fused per-batch reductions on the MXU:
        #   rows [0 , 2B)  -> interleaved numerators (sum_i w*dst_x, w*dst_y)
        #   rows [2B, 4B)  -> per-batch denominator, duplicated per channel
        res = jnp.dot(A, w, preferred_element_type=jnp.float32,
                      precision=jax.lax.Precision.HIGHEST)
        out_ref[...] = res[0:nb] * _fast_recip(res[nb:2 * nb])

    # --- rare path: PyTorch isinf fix-up (indicator weights) -----------------
    @pl.when(min_rsq <= _TINY)
    def _():
        co = rsq <= _TINY
        cf = co.astype(jnp.float32)
        rsq_safe = jnp.where(co, 1.0, rsq)
        w = jnp.where(co, 0.0, _fast_recip(rsq_safe))
        res_w = jnp.dot(A, w, preferred_element_type=jnp.float32,
                        precision=jax.lax.Precision.HIGHEST)
        res_c = jnp.dot(A, cf, preferred_element_type=jnp.float32,
                        precision=jax.lax.Precision.HIGHEST)
        hit = res_c[nb:2 * nb] > 0.0                  # per batch & column
        num = jnp.where(hit, res_c[0:nb], res_w[0:nb])
        den = jnp.where(hit, res_c[nb:2 * nb], res_w[nb:2 * nb])
        out_ref[...] = num * _fast_recip(den)


@functools.partial(jax.jit, static_argnums=(2,))
def idw_warp(src, dst, s):
    """src, dst: (B, n, 2) float32.  Returns (B, 2, s, s) float32 (NCHW)."""
    B, n, _ = src.shape
    M = s * s
    Bn = B * n
    Mpad, TM = _choose_m_tiling(M, Bn)
    R = ((4 * B + 7) // 8) * 8            # pad reduction rows to a sublane group
    # TODO(synk): for very large B*n (> ~1000) add a batch-tile grid axis so
    # the (B*n, TM) temporaries stay inside the VMEM budget.

    src = src.astype(jnp.float32)
    dst = dst.astype(jnp.float32)

    # Sublane-oriented coordinate columns (avoids 2-lane layouts in the kernel).
    srcx = src[..., 0].reshape(Bn, 1)
    srcy = src[..., 1].reshape(Bn, 1)

    # Reduction matrix A (R, B*n):
    #   rows [0 , 2B): interleaved numerators, row 2b = 1[batch b]*dst_x,
    #                  row 2b+1 = 1[batch b]*dst_y
    #   rows [2B, 4B): per-batch denominator indicator, duplicated per channel
    #   remaining rows: zero padding (never read by the kernel slices).
    blk = jnp.repeat(jnp.eye(B, dtype=jnp.float32), n, axis=1)      # (B, B*n)
    dstx = dst[..., 0].reshape(1, Bn)
    dsty = dst[..., 1].reshape(1, Bn)
    num_rows = jnp.stack([blk * dstx, blk * dsty], axis=1).reshape(2 * B, Bn)
    den_rows = jnp.stack([blk, blk], axis=1).reshape(2 * B, Bn)
    A = jnp.concatenate(
        [num_rows, den_rows, jnp.zeros((R - 4 * B, Bn), jnp.float32)], axis=0)

    kernel = functools.partial(_idw_kernel, B=B, s=s, TM=TM)

    out = pl.pallas_call(
        kernel,
        out_shape=jax.ShapeDtypeStruct((2 * B, Mpad), jnp.float32),
        grid_spec=pltpu.PrefetchScalarGridSpec(
            num_scalar_prefetch=0,
            grid=(Mpad // TM,),
            in_specs=[
                pl.BlockSpec((Bn, 1), lambda m: (0, 0)),     # srcx
                pl.BlockSpec((Bn, 1), lambda m: (0, 0)),     # srcy
                pl.BlockSpec((R, Bn), lambda m: (0, 0)),     # A
            ],
            out_specs=pl.BlockSpec((2 * B, TM), lambda m: (0, m)),
        ),
        compiler_params=pltpu.CompilerParams(
            dimension_semantics=("parallel",),
            vmem_limit_bytes=32 * 1024 * 1024),
    )(srcx, srcy, A)

    if Mpad != M:                     # ragged / non-lane-aligned s: crop pad cols
        out = out[:, :M]
    # Rows are interleaved [x0, y0, x1, y1, ...] -> contiguous reshape, no copy.
    return out.reshape(B, 2, s, s)


def idw_warp_ref(src, dst, s):
    """Pure-JAX reference mirroring the PyTorch forward (same grid formula)."""
    lin = jnp.arange(s, dtype=jnp.float32) * (2.0 / (s - 1.0)) - 1.0
    iy, ix = jnp.meshgrid(lin, lin, indexing="ij")
    gs = jnp.stack((ix, iy), axis=2).reshape(1, -1, 2)      # (1, M, 2)
    delta = src[:, :, None, :] - gs[:, None, :, :]          # (B, n, M, 2)
    rsq = jnp.sum(delta ** 2, axis=3)                       # (B, n, M)
    w = 1.0 / rsq
    t = jnp.isinf(w)
    any_t = jnp.any(t, axis=1, keepdims=True)               # per-batch fix-up
    w = jnp.where(any_t, t.astype(jnp.float32), w)
    den = jnp.sum(w, axis=1)                                # (B, M)
    wwx = jnp.sum(w * dst[..., 0:1], axis=1) / den
    wwy = jnp.sum(w * dst[..., 1:2], axis=1) / den
    out = jnp.stack((wwx, wwy), axis=2)                     # (B, M, 2)
    B = src.shape[0]
    return out.reshape(B, s, s, 2).transpose(0, 3, 1, 2)


if __name__ == "__main__":
    s = 16          # output sampling grid is s x s
    B, n = 2, 8     # batch, number of control points

    key = jax.random.PRNGKey(0)
    k1, k2 = jax.random.split(key)
    src = jax.random.uniform(k1, (B, n, 2), jnp.float32, minval=-1.0, maxval=1.0)
    dst = jax.random.uniform(k2, (B, n, 2), jnp.float32, minval=-1.0, maxval=1.0)
    # One control point placed exactly on a grid point to exercise the
    # coincidence fix-up path (rsq == 0 / isinf in the reference).
    src = src.at[0, 0].set(jnp.array([-1.0, -1.0], jnp.float32))

    out = idw_warp(src, dst, s)
    jax.block_until_ready(out)
    ref = idw_warp_ref(src, dst, s)
    assert out.shape == (B, 2, s, s)
    err = float(jnp.max(jnp.abs(out - ref)))
    assert err < 1e-4, f"max abs err {err}"

    # Non-lane-aligned s exercises the pad/crop fallback path (M=225 -> 256).
    s2 = 15
    src2 = jax.random.uniform(k2, (B, n, 2), jnp.float32, minval=-1.0, maxval=1.0)
    dst2 = jax.random.uniform(k1, (B, n, 2), jnp.float32, minval=-1.0, maxval=1.0)
    out2 = idw_warp(src2, dst2, s2)
    jax.block_until_ready(out2)
    ref2 = idw_warp_ref(src2, dst2, s2)
    err2 = float(jnp.max(jnp.abs(out2 - ref2)))
    assert out2.shape == (B, 2, s2, s2)
    assert err2 < 1e-4, f"max abs err {err2}"

    print("KERNEL_OK")
</pallas_src>

<mosaic_0001>
module attributes {stable_mosaic.version = 11 : i64} {
  func.func @_idw_kernel(%arg0: i32, %arg1: memref<16x1xf32, #tpu.memory_space<vmem>>, %arg2: memref<16x1xf32, #tpu.memory_space<vmem>>, %arg3: memref<8x16xf32, #tpu.memory_space<vmem>>, %arg4: memref<4x128xf32, #tpu.memory_space<vmem>>) attributes {dimension_semantics = [#tpu.dimension_semantics<parallel>], iteration_bounds = array<i64: 2>, scalar_prefetch = 0 : i64, scratch_operands = 0 : i64, tpu.core_type = #tpu.core_type<tc>, window_params = [{pipeline_mode = #tpu.pipeline_mode<synchronous>, transform_indices = @transform_0, window_bounds = array<i64: 16, 1>}, {pipeline_mode = #tpu.pipeline_mode<synchronous>, transform_indices = @transform_1, window_bounds = array<i64: 16, 1>}, {pipeline_mode = #tpu.pipeline_mode<synchronous>, transform_indices = @transform_2, window_bounds = array<i64: 8, 16>}, {transform_indices = @transform_3, window_bounds = array<i64: 4, 128>}]} {
    %c128_i32 = arith.constant 128 : i32
    %0 = arith.muli %arg0, %c128_i32 : i32
    %1 = tpu.iota {dimensions = array<i32: 1>} : vector<1x128xi32>
    %2 = vector.broadcast %0 : i32 to vector<1x128xi32>
    %3 = arith.addi %2, %1 : vector<1x128xi32>
    %4 = arith.sitofp %3 : vector<1x128xi32> to vector<1x128xf32>
    %cst = arith.constant 1.600000e+01 : f32
    %5 = vector.broadcast %cst : f32 to vector<1x128xf32>
    %6 = arith.divf %4, %5 : vector<1x128xf32>
    %7 = math.floor %6 : vector<1x128xf32>
    %cst_0 = arith.constant 1.600000e+01 : f32
    %8 = vector.broadcast %cst_0 : f32 to vector<1x128xf32>
    %9 = arith.mulf %7, %8 : vector<1x128xf32>
    %10 = arith.subf %4, %9 : vector<1x128xf32>
    %cst_1 = arith.constant 0.13333334 : f32
    %11 = vector.broadcast %cst_1 : f32 to vector<1x128xf32>
    %12 = arith.mulf %10, %11 : vector<1x128xf32>
    %cst_2 = arith.constant 1.000000e+00 : f32
    %13 = vector.broadcast %cst_2 : f32 to vector<1x128xf32>
    %14 = arith.subf %12, %13 : vector<1x128xf32>
    %cst_3 = arith.constant 0.13333334 : f32
    %15 = vector.broadcast %cst_3 : f32 to vector<1x128xf32>
    %16 = arith.mulf %7, %15 : vector<1x128xf32>
    %cst_4 = arith.constant 1.000000e+00 : f32
    %17 = vector.broadcast %cst_4 : f32 to vector<1x128xf32>
    %18 = arith.subf %16, %17 : vector<1x128xf32>
    %c0 = arith.constant 0 : index
    %c0_5 = arith.constant 0 : index
    %19 = vector.load %arg1[%c0, %c0_5] : memref<16x1xf32, #tpu.memory_space<vmem>>, vector<16x1xf32>
    %20 = vector.broadcast %19 : vector<16x1xf32> to vector<16x128xf32>
    %21 = vector.broadcast %14 : vector<1x128xf32> to vector<16x128xf32>
    %22 = arith.subf %20, %21 : vector<16x128xf32>
    %c0_6 = arith.constant 0 : index
    %c0_7 = arith.constant 0 : index
    %23 = vector.load %arg2[%c0_6, %c0_7] : memref<16x1xf32, #tpu.memory_space<vmem>>, vector<16x1xf32>
    %24 = vector.broadcast %23 : vector<16x1xf32> to vector<16x128xf32>
    %25 = vector.broadcast %18 : vector<1x128xf32> to vector<16x128xf32>
    %26 = arith.subf %24, %25 : vector<16x128xf32>
    %27 = arith.mulf %22, %22 : vector<16x128xf32>
    %28 = arith.mulf %26, %26 : vector<16x128xf32>
    %29 = arith.addf %27, %28 : vector<16x128xf32>
    %c0_8 = arith.constant 0 : index
    %c0_9 = arith.constant 0 : index
    %30 = vector.load %arg3[%c0_8, %c0_9] : memref<8x16xf32, #tpu.memory_space<vmem>>, vector<8x16xf32>
    %31 = vector.shape_cast %29 : vector<16x128xf32> to vector<1x16x128xf32>
    %cst_10 = arith.constant dense<0x7F800000> : vector<1xf32>
    %32 = vector.multi_reduction <minimumf>, %31, %cst_10 [1, 2] : vector<1x16x128xf32> to vector<1xf32>
    %33 = vector.shape_cast %32 : vector<1xf32> to vector<1x1x1xf32>
    %34 = vector.extract %33[0, 0, 0] : f32 from vector<1x1x1xf32>
    %cst_11 = arith.constant 1.17549435E-38 : f32
    %35 = arith.cmpf ogt, %34, %cst_11 : f32
    %36 = arith.extui %35 : i1 to i32
    %c0_i32 = arith.constant 0 : i32
    %37 = arith.cmpi ne, %36, %c0_i32 : i32
    scf.if %37 {
      %41 = tpu.reciprocal %29 {approx = true} : vector<16x128xf32> -> vector<16x128xf32>
      %42 = arith.mulf %29, %41 : vector<16x128xf32>
      %cst_14 = arith.constant 2.000000e+00 : f32
      %43 = vector.broadcast %cst_14 : f32 to vector<16x128xf32>
      %44 = arith.subf %43, %42 : vector<16x128xf32>
      %45 = arith.mulf %41, %44 : vector<16x128xf32>
      %cst_15 = arith.constant dense<0.000000e+00> : vector<8x128xf32>
      %46 = tpu.matmul %30, %45, %cst_15 {dimension_numbers = #tpu.dot_dimension_numbers<[1], [0], [0], [1], [0, 0, 1, 1], [], []>, precision = #tpu.contract_precision<fp32>} : vector<8x16xf32>, vector<16x128xf32>, vector<8x128xf32> -> vector<8x128xf32>
      %47 = vector.extract_strided_slice %46 {offsets = [0, 0], sizes = [4, 128], strides = [1, 1]} : vector<8x128xf32> to vector<4x128xf32>
      %48 = vector.extract_strided_slice %46 {offsets = [4, 0], sizes = [4, 128], strides = [1, 1]} : vector<8x128xf32> to vector<4x128xf32>
      %49 = tpu.reciprocal %48 {approx = true} : vector<4x128xf32> -> vector<4x128xf32>
      %50 = arith.mulf %48, %49 : vector<4x128xf32>
      %cst_16 = arith.constant 2.000000e+00 : f32
      %51 = vector.broadcast %cst_16 : f32 to vector<4x128xf32>
      %52 = arith.subf %51, %50 : vector<4x128xf32>
      %53 = arith.mulf %49, %52 : vector<4x128xf32>
      %54 = arith.mulf %47, %53 : vector<4x128xf32>
      %c0_17 = arith.constant 0 : index
      %c0_18 = arith.constant 0 : index
      %55 = vector.load %arg4[%c0_17, %c0_18] : memref<4x128xf32, #tpu.memory_space<vmem>>, vector<4x128xf32>
      tpu.vector_store %arg4[%c0_17, %c0_18], %54 {strides = array<i32>} : memref<4x128xf32, #tpu.memory_space<vmem>>, vector<4x128xf32>,
    } else {
    }
    %cst_12 = arith.constant 1.17549435E-38 : f32
    %38 = arith.cmpf ole, %34, %cst_12 : f32
    %39 = arith.extui %38 : i1 to i32
    %c0_i32_13 = arith.constant 0 : i32
    %40 = arith.cmpi ne, %39, %c0_i32_13 : i32
    scf.if %40 {
      %cst_14 = arith.constant 1.17549435E-38 : f32
      %41 = vector.broadcast %cst_14 : f32 to vector<16x128xf32>
      %42 = arith.cmpf ole, %29, %41 : vector<16x128xf32>
      %43 = arith.extui %42 : vector<16x128xi1> to vector<16x128xi32>
      %44 = arith.sitofp %43 : vector<16x128xi32> to vector<16x128xf32>
      %cst_15 = arith.constant 1.000000e+00 : f32
      %45 = vector.broadcast %cst_15 : f32 to vector<16x128xf32>
      %46 = arith.select %42, %45, %29 : vector<16x128xi1>, vector<16x128xf32>
      %47 = tpu.reciprocal %46 {approx = true} : vector<16x128xf32> -> vector<16x128xf32>
      %48 = arith.mulf %46, %47 : vector<16x128xf32>
      %cst_16 = arith.constant 2.000000e+00 : f32
      %49 = vector.broadcast %cst_16 : f32 to vector<16x128xf32>
      %50 = arith.subf %49, %48 : vector<16x128xf32>
      %51 = arith.mulf %47, %50 : vector<16x128xf32>
      %cst_17 = arith.constant 0.000000e+00 : f32
      %52 = vector.broadcast %cst_17 : f32 to vector<16x128xf32>
      %53 = arith.select %42, %52, %51 : vector<16x128xi1>, vector<16x128xf32>
      %cst_18 = arith.constant dense<0.000000e+00> : vector<8x128xf32>
      %54 = tpu.matmul %30, %53, %cst_18 {dimension_numbers = #tpu.dot_dimension_numbers<[1], [0], [0], [1], [0, 0, 1, 1], [], []>, precision = #tpu.contract_precision<fp32>} : vector<8x16xf32>, vector<16x128xf32>, vector<8x128xf32> -> vector<8x128xf32>
      %cst_19 = arith.constant dense<0.000000e+00> : vector<8x128xf32>
      %55 = tpu.matmul %30, %44, %cst_19 {dimension_numbers = #tpu.dot_dimension_numbers<[1], [0], [0], [1], [0, 0, 1, 1], [], []>, precision = #tpu.contract_precision<fp32>} : vector<8x16xf32>, vector<16x128xf32>, vector<8x128xf32> -> vector<8x128xf32>
      %56 = vector.extract_strided_slice %55 {offsets = [4, 0], sizes = [4, 128], strides = [1, 1]} : vector<8x128xf32> to vector<4x128xf32>
      %cst_20 = arith.constant 0.000000e+00 : f32
      %57 = vector.broadcast %cst_20 : f32 to vector<4x128xf32>
      %58 = arith.cmpf ogt, %56, %57 : vector<4x128xf32>
      %59 = vector.extract_strided_slice %55 {offsets = [0, 0], sizes = [4, 128], strides = [1, 1]} : vector<8x128xf32> to vector<4x128xf32>
      %60 = vector.extract_strided_slice %54 {offsets = [0, 0], sizes = [4, 128], strides = [1, 1]} : vector<8x128xf32> to vector<4x128xf32>
      %61 = arith.select %58, %59, %60 : vector<4x128xi1>, vector<4x128xf32>
      %62 = vector.extract_strided_slice %55 {offsets = [4, 0], sizes = [4, 128], strides = [1, 1]} : vector<8x128xf32> to vector<4x128xf32>
      %63 = vector.extract_strided_slice %54 {offsets = [4, 0], sizes = [4, 128], strides = [1, 1]} : vector<8x128xf32> to vector<4x128xf32>
      %64 = arith.select %58, %62, %63 : vector<4x128xi1>, vector<4x128xf32>
      %65 = tpu.reciprocal %64 {approx = true} : vector<4x128xf32> -> vector<4x128xf32>
      %66 = arith.mulf %64, %65 : vector<4x128xf32>
      %cst_21 = arith.constant 2.000000e+00 : f32
      %67 = vector.broadcast %cst_21 : f32 to vector<4x128xf32>
      %68 = arith.subf %67, %66 : vector<4x128xf32>
      %69 = arith.mulf %65, %68 : vector<4x128xf32>
      %70 = arith.mulf %61, %69 : vector<4x128xf32>
      %c0_22 = arith.constant 0 : index
      %c0_23 = arith.constant 0 : index
      %71 = vector.load %arg4[%c0_22, %c0_23] : memref<4x128xf32, #tpu.memory_space<vmem>>, vector<4x128xf32>
      tpu.vector_store %arg4[%c0_22, %c0_23], %70 {strides = array<i32>} : memref<4x128xf32, #tpu.memory_space<vmem>>, vector<4x128xf32>,
    } else {
    }
    return
  }
  func.func @transform_0(%arg0: i32) -> (i32, i32) {
    %c0_i32 = arith.constant 0 : i32
    %c0_i32_0 = arith.constant 0 : i32
    %c0_i32_1 = arith.constant 0 : i32
    return %c0_i32, %c0_i32_0 : i32, i32
  }
  func.func @transform_1(%arg0: i32) -> (i32, i32) {
    %c0_i32 = arith.constant 0 : i32
    %c0_i32_0 = arith.constant 0 : i32
    %c0_i32_1 = arith.constant 0 : i32
    return %c0_i32, %c0_i32_0 : i32, i32
  }
  func.func @transform_2(%arg0: i32) -> (i32, i32) {
    %c0_i32 = arith.constant 0 : i32
    %c0_i32_0 = arith.constant 0 : i32
    %c0_i32_1 = arith.constant 0 : i32
    return %c0_i32, %c0_i32_0 : i32, i32
  }
  func.func @transform_3(%arg0: i32) -> (i32, i32) {
    %c0_i32 = arith.constant 0 : i32
    %c0_i32_0 = arith.constant 0 : i32
    return %c0_i32, %arg0 : i32, i32
  }
}

</mosaic_0001>

<llo_original>
// kernel: squeeze.0
$region0: #{squeeze.0}
  %s0 = inlined_call_operand.vmem [shape: f32[2,8], index: 0, kind: input, shape index: {}]
  %s1 = inlined_call_operand.vmem [shape: f32[16,1], index: 1, kind: output, shape index: {}]
  $region1: #{squeeze.0} parent=0
    #allocation0 [shape = 'u8[4096]{0}', space=vmem, size = 0x1000, scoped, tag = 'scoped mem for input reshape']
    %s3 = sshll.u32 1, 2
    %s4 = ssub.s32 %s3, 1
    %v5 = vld [vmem:[%s0] sm:%s4]
    %6 = vst [vmem:[#allocation0] sm:%s4] %v5
    %v7 = vld [vmem:[#allocation0] sm:$0x3]
    %vm8 = vcmask 7168
    %9 = vst.msk [vmem:[%s1] ss:$8 sm:$0x3] %vm8, %v7
    %v10 = vld [vmem:[#allocation0] sm:$0x3]
    %11 = vrot.lane.b32.xlu0 %v10, 127
    %v12 = vpop.permute.xlu0 %11
    %vm13 = vcmask 7168
    %s14 = scalar_lea.vmem %s1, 1
    %15 = vst.msk [vmem:[%s14] ss:$8 sm:$0x3] %vm13, %v12
    %v16 = vld [vmem:[#allocation0] sm:$0x3]
    %17 = vrot.lane.b32.xlu0 %v16, 126
    %v18 = vpop.permute.xlu0 %17
    %vm19 = vcmask 7168
    %s20 = scalar_lea.vmem %s1, 2
    %21 = vst.msk [vmem:[%s20] ss:$8 sm:$0x3] %vm19, %v18
    %v22 = vld [vmem:[#allocation0] sm:$0x3]
    %23 = vrot.lane.b32.xlu0 %v22, 125
    %v24 = vpop.permute.xlu0 %23
    %vm25 = vcmask 7168
    %s26 = scalar_lea.vmem %s1, 3
    %27 = vst.msk [vmem:[%s26] ss:$8 sm:$0x3] %vm25, %v24
    %v28 = vld [vmem:[#allocation0] sm:$0x3]
    %29 = vrot.lane.b32.xlu0 %v28, 124
    %v30 = vpop.permute.xlu0 %29
    %vm31 = vcmask 7168
    %s32 = scalar_lea.vmem %s1, 4
    %33 = vst.msk [vmem:[%s32] ss:$8 sm:$0x3] %vm31, %v30
    %v34 = vld [vmem:[#allocation0] sm:$0x3]
    %35 = vrot.lane.b32.xlu0 %v34, 123
    %v36 = vpop.permute.xlu0 %35
    %vm37 = vcmask 7168
    %s38 = scalar_lea.vmem %s1, 5
    %39 = vst.msk [vmem:[%s38] ss:$8 sm:$0x3] %vm37, %v36
    %v40 = vld [vmem:[#allocation0] sm:$0x3]
    %41 = vrot.lane.b32.xlu0 %v40, 122
    %v42 = vpop.permute.xlu0 %41
    %vm43 = vcmask 7168
    %s44 = scalar_lea.vmem %s1, 6
    %45 = vst.msk [vmem:[%s44] ss:$8 sm:$0x3] %vm43, %v42
    %v46 = vld [vmem:[#allocation0] sm:$0x3]
    %47 = vrot.lane.b32.xlu0 %v46, 121
    %v48 = vpop.permute.xlu0 %47
    %vm49 = vcmask 7168
    %s50 = scalar_lea.vmem %s1, 7
    %51 = vst.msk [vmem:[%s50] ss:$8 sm:$0x3] %vm49, %v48

// kernel: idw_warp.1
$region0: #{idw_warp.1}
  #allocation0 [shape = 'u32[]', space=smem, size = 0x4, offset = 0x4, fixed_abs, tag = 'smem constant byte address 0x4 - core index']
  #allocation1 [shape = 'u32[144,128]{1,0:T(1,128)}', space=vmem, size = 0x12000, scoped, tag = 'internal scratch']
  %s0 = inlined_call_operand.vmem [shape: f32[16,1], index: 0, kind: input, shape index: {}]
  %s1 = inlined_call_operand.vmem [shape: f32[16,1], index: 1, kind: input, shape index: {}]
  %s2 = inlined_call_operand.vmem [shape: f32[8,16], index: 2, kind: input, shape index: {}]
  %s3 = inlined_call_operand.vmem [shape: f32[4,256], index: 3, kind: output, shape index: {}]
  %s4 = sld [smem:[#allocation0]]
  $region53: #{idw_warp.1} parent=0
    _
  %s6 = ssub.s32 1, %s4
  %s7 = scalar_select 0, %s6, %s4
  loop: start=0, step=1, limit=4
  $region2: #{idw_warp.1} parent=0 // loop_pre_header
    _
  $region3: #{idw_warp.1} parent=0 // loop_header
    %s9 = sphi 0, %s13
    %p10 = scmp.ge.s32.totalorder %s9, 4
    %s17 = sphi 0, %s17
    %s19 = sphi 0, %s17
    %s20 = sphi 0, %s19
    %s34 = sphi 0, %s20
    %s38 = sphi 0, %s38
    %s40 = sphi 0, %s38
    %s41 = sphi 0, %s40
    %s55 = sphi 0, %s41
    %s59 = sphi 0, %s59
    %s61 = sphi 0, %s59
    %s62 = sphi 0, %s61
    %s76 = sphi 0, %s62
    %s82 = sphi 0, %s84
    %s85 = sphi 0, %s82
    %s86 = sphi 0, %s85
    %s102 = sphi 0, %s86
  $region4: #{idw_warp.1} parent=0 // loop_header_branch
    %12 = sbr.rel (%p10) target = $region8
  $region5: #{idw_warp.1} parent=0 // loop_body
    %s14 = ssub.s32 %s9, 1
    %s15 = ssub.s32 %s9, 2
    %s16 = sadd.s32 %s9, 1
    %s18 = sadd.s32 %s17, 1
    %p21 = scmp.eq.s32.totalorder %s9, 1
    %p22 = scmp.ne.s32.totalorder %s17, %s19
    %p23 = scmp.eq.s32.totalorder %s9, 0
    %p24 = por %p22, %p23
    %p25 = scmp.ne.s32.totalorder %s17, %s19
    %p26 = scmp.eq.s32.totalorder %s14, 1
    %p27 = por %p25, %p26
    %p28 = scmp.ne.s32.totalorder %s19, %s20
    %p29 = scmp.eq.s32.totalorder %s14, 0
    %p30 = por %p28, %p29
    %p31 = scmp.ne.s32.totalorder %s19, %s20
    %p32 = scmp.eq.s32.totalorder %s15, 1
    %p33 = por %p31, %p32
    %p35 = scmp.ne.s32.totalorder %s20, %s34
    %p36 = scmp.eq.s32.totalorder %s15, 0
    %p37 = por %p35, %p36
    %s39 = sadd.s32 %s38, 1
    %p42 = scmp.eq.s32.totalorder %s9, 1
    %p43 = scmp.ne.s32.totalorder %s38, %s40
    %p44 = scmp.eq.s32.totalorder %s9, 0
    %p45 = por %p43, %p44
    %p46 = scmp.ne.s32.totalorder %s38, %s40
    %p47 = scmp.eq.s32.totalorder %s14, 1
    %p48 = por %p46, %p47
    %p49 = scmp.ne.s32.totalorder %s40, %s41
    %p50 = scmp.eq.s32.totalorder %s14, 0
    %p51 = por %p49, %p50
    %p52 = scmp.ne.s32.totalorder %s40, %s41
    %p53 = scmp.eq.s32.totalorder %s15, 1
    %p54 = por %p52, %p53
    %p56 = scmp.ne.s32.totalorder %s41, %s55
    %p57 = scmp.eq.s32.totalorder %s15, 0
    %p58 = por %p56, %p57
    %s60 = sadd.s32 %s59, 1
    %p63 = scmp.eq.s32.totalorder %s9, 1
    %p64 = scmp.ne.s32.totalorder %s59, %s61
    %p65 = scmp.eq.s32.totalorder %s9, 0
    %p66 = por %p64, %p65
    %p67 = scmp.ne.s32.totalorder %s59, %s61
    %p68 = scmp.eq.s32.totalorder %s14, 1
    %p69 = por %p67, %p68
    %p70 = scmp.ne.s32.totalorder %s61, %s62
    %p71 = scmp.eq.s32.totalorder %s14, 0
    %p72 = por %p70, %p71
    %p73 = scmp.ne.s32.totalorder %s61, %s62
    %p74 = scmp.eq.s32.totalorder %s15, 1
    %p75 = por %p73, %p74
    %p77 = scmp.ne.s32.totalorder %s62, %s76
    %p78 = scmp.eq.s32.totalorder %s15, 0
    %p79 = por %p77, %p78
    %s80 = ssub.s32 %s9, %s16
    %p81 = scmp.eq.s32.totalorder %s80, 0
    %s83 = sadd.s32 %s82, 1
    %s84 = scalar_select %p81, %s82, %s83
    %p87 = pneg %p81
    %p88 = scmp.eq.s32.totalorder %s9, 1
    %p89 = por %p87, %p88
    %p90 = scmp.ne.s32.totalorder %s82, %s85
    %p91 = scmp.eq.s32.totalorder %s9, 0
    %p92 = por %p90, %p91
    %p93 = scmp.ne.s32.totalorder %s82, %s85
    %p94 = scmp.eq.s32.totalorder %s14, 1
    %p95 = por %p93, %p94
    %p96 = scmp.ne.s32.totalorder %s85, %s86
    %p97 = scmp.eq.s32.totalorder %s14, 0
    %p98 = por %p96, %p97
    %p99 = scmp.ne.s32.totalorder %s85, %s86
    %p100 = scmp.eq.s32.totalorder %s15, 1
    %p101 = por %p99, %p100
    %p103 = scmp.ne.s32.totalorder %s86, %s102
    %p104 = scmp.eq.s32.totalorder %s15, 0
    %p105 = por %p103, %p104
    %p106 = scmp.le.s32.totalorder 1, %s9
    %p107 = scmp.lt.s32.totalorder %s9, 3
    %p108 = pnand %p106, %p107
    %p109 = pneg %p108
    // Predicated region
    $region9: #{idw_warp.1} parent=5 // pred_check
      _
    $region10: #{idw_warp.1} parent=5 // pred_check_branch
      %111 = sbr.rel (%p108) target = $region12
    $region11: #{idw_warp.1} parent=5 // pred_region
      %s112 = ssub.s32 %s9, 1
      // Predicated region
      $region13: #{idw_warp.1} parent=11 // pred_check
        %p113 = pneg %p30
      $region14: #{idw_warp.1} parent=11 // pred_check_branch
        %115 = sbr.rel (%p113) target = $region16
      $region15: #{idw_warp.1} parent=11 // pred_region
        _
      $region16: #{idw_warp.1} parent=11 // pred_fallthru
        _
      // Predicated region
      $region17: #{idw_warp.1} parent=11 // pred_check
        %p116 = pneg %p51
      $region18: #{idw_warp.1} parent=11 // pred_check_branch
        %118 = sbr.rel (%p116) target = $region20
      $region19: #{idw_warp.1} parent=11 // pred_region
        _
      $region20: #{idw_warp.1} parent=11 // pred_fallthru
        _
      // Predicated region
      $region21: #{idw_warp.1} parent=11 // pred_check
        %p119 = pneg %p72
      $region22: #{idw_warp.1} parent=11 // pred_check_branch
        %121 = sbr.rel (%p119) target = $region24
      $region23: #{idw_warp.1} parent=11 // pred_region
        _
      $region24: #{idw_warp.1} parent=11 // pred_fallthru
        _
    $region12: #{idw_warp.1} parent=5 // pred_fallthru
      _
    %p122 = scmp.lt.s32.totalorder %s9, 2
    // Predicated region
    $region25: #{idw_warp.1} parent=5 // pred_check
      %p123 = pneg %p122
    $region26: #{idw_warp.1} parent=5 // pred_check_branch
      %125 = sbr.rel (%p123) target = $region28
    $region27: #{idw_warp.1} parent=5 // pred_region
      _
    $region28: #{idw_warp.1} parent=5 // pred_fallthru
      _
    %p126 = scmp.le.s32.totalorder 1, %s9
    %p127 = scmp.lt.s32.totalorder %s9, 3
    %p128 = pnand %p126, %p127
    %p129 = pneg %p128
    // Predicated region
    $region29: #{idw_warp.1} parent=5 // pred_check
      _
    $region30: #{idw_warp.1} parent=5 // pred_check_branch
      %131 = sbr.rel (%p128) target = $region32
    $region31: #{idw_warp.1} parent=5 // pred_region
      %s132 = ssub.s32 %s9, 1
      %p133 = pneg %p30
      %p134 = pneg %p27
      %p135 = pneg %p51
      %p136 = pneg %p48
      %p137 = pneg %p72
      %p138 = pneg %p69
      %p139 = pneg %p98
      %p140 = pneg %p95
      %p141 = scmp.lt.s32.totalorder %s14, 1
      %s142 = scalar_select %p141, %s14, 1
      %s143 = smul.addr %s142, 4
      %s144 = scalar_lea.vmem %s3, %s143
      %p145 = scmp.lt.s32.totalorder %s14, 1
      %s146 = scalar_select %p145, %s14, 1
      %s147 = smul.addr %s146, 4
      %s148 = scalar_lea.vmem %s3, %s147
      %s149 = smul.u32 %s14, 128
      %v150 = vlaneseq
      %v151 = vand.u32 %v150, 127
      %v152 = vstv %s149
      %v153 = vadd.s32 %v152, %v151
      %v154 = vcvt.s32.f32 %v153
      %v155 = vrcp.pop 16.0
      %v156 = vmul.f32 %v154, %v155
      %v157 = vfloor.f32 %v156
      %v158 = vmul.f32 %v157, 16.0
      %v159 = vsub.f32 %v154, %v158
      %v160 = vmul.f32 %v159, 0.13333334
      %v161 = vsub.f32 %v160, 1.0
      %v162 = vmul.f32 %v157, 0.13333334
      %v163 = vsub.f32 %v162, 1.0
      %v164 = vld [vmem:[%s0] sm:$0xff]
      %v165 = vld [vmem:[%s0 + $0x8] sm:$0xff]
      %167 = vset.pattern.permute.xlu0 0
      %168 = vperm.xlu0 %167, %v164
      %v169 = vpop.permute.xlu0 %168
      %172 = vset.pattern.permute.xlu0 0
      %173 = vperm.xlu0 %172, %v165
      %v174 = vpop.permute.xlu0 %173
      %v176 = vsub.f32 %v169, %v161
      %v177 = vsub.f32 %v174, %v161
      %v178 = vld [vmem:[%s1] sm:$0xff]
      %v179 = vld [vmem:[%s1 + $0x8] sm:$0xff]
      %181 = vset.pattern.permute.xlu0 0
      %182 = vperm.xlu0 %181, %v178
      %v183 = vpop.permute.xlu0 %182
      %186 = vset.pattern.permute.xlu0 0
      %187 = vperm.xlu0 %186, %v179
      %v188 = vpop.permute.xlu0 %187
      %v190 = vsub.f32 %v183, %v163
      %v191 = vsub.f32 %v188, %v163
      %v192 = vmul.f32 %v176, %v176
      %v193 = vmul.f32 %v177, %v177
      %v194 = vmul.f32 %v190, %v190
      %v195 = vmul.f32 %v191, %v191
      %v196 = vadd.f32 %v192, %v194
      %v197 = vadd.f32 %v193, %v195
      %v198 = vld [vmem:[%s2] sm:$0xff]
      %v199 = vmin.f32 %v196, %v197
      %200 = vmin.xlane.f32.xlu0 %v199
      %v201 = vpop.xlane.xlu0 %200
      %v202 = vrot.slane %v201, 4
      %v203 = vmin.f32 %v201, %v202
      %v204 = vrot.slane %v203, 2
      %v205 = vmin.f32 %v203, %v204
      %v206 = vrot.slane %v205, 1
      %v207 = vmin.f32 %v205, %v206
      %s208 = vtos %v207
      %p209 = scmp.gt.f32.partialorder %s208, 1.1754944e-38
      // Predicated region
      $region33: #{idw_warp.1} parent=31 // pred_check
        %p210 = pneg %p209
      $region34: #{idw_warp.1} parent=31 // pred_check_branch
        %212 = sbr.rel (%p210) target = $region36
      $region35: #{idw_warp.1} parent=31 // pred_region
        %v213 = vrcp.pop %v196
        %v214 = vrcp.pop %v197
        %v215 = vmul.f32 %v196, %v213
        %v216 = vmul.f32 %v197, %v214
        %v217 = vsub.f32 2.0, %v215
        %v218 = vsub.f32 2.0, %v216
        %v219 = vmul.f32 %v213, %v217
        %v220 = vmul.f32 %v214, %v218
        %vm221 = vcmask 130048
        %v223 = vsel %vm221, %v198, 0
        %225 = vmatprep.subr.mxu0 0.0
        %226 = vmatpush1.msra.mxu0 0.0
        %227 = vmatprep.subr.mxu0 0.0
        %228 = vmatpush1.msra.mxu0 0.0
        %229 = vmatprep.subr.mxu0 0.0
        %230 = vmatpush1.msra.mxu0 0.0
        %231 = vmatprep.subr.mxu0 0.0
        %232 = vmatpush1.msra.mxu0 0.0
        %233 = vmatprep.subr.mxu0 0.0
        %234 = vmatpush1.msra.mxu0 0.0
        %235 = vmatprep.subr.mxu0 0.0
        %236 = vmatpush1.msra.mxu0 0.0
        %237 = vmatprep.subr.mxu0 0.0
        %238 = vmatpush1.msra.mxu0 0.0
        %239 = vmatprep.subr.mxu0 0.0
        %240 = vmatpush1.msra.mxu0 0.0
        %241 = vmatprep.subr.mxu0 0.0
        %242 = vmatpush1.msra.mxu0 0.0
        %243 = vmatprep.subr.mxu0 0.0
        %244 = vmatpush1.msra.mxu0 0.0
        %245 = vmatprep.subr.mxu0 0.0
        %246 = vmatpush1.msra.mxu0 0.0
        %247 = vmatprep.subr.mxu0 0.0
        %248 = vmatpush1.msra.mxu0 0.0
        %249 = vmatprep.subr.mxu0 0.0
        %250 = vmatpush1.msra.mxu0 0.0
        %251 = vmatprep.subr.mxu0 0.0
        %252 = vmatpush1.msra.mxu0 0.0
        %253 = vmatprep.subr.mxu0 0.0
        %v254 = vand.u32 %v220, 4294901760
        %255 = vmatpush1.msra.mxu0 %v254
        %256 = vmatprep.subr.mxu0 0.0
        %v257 = vand.u32 %v219, 4294901760
        %258 = vmatpush1.msra.mxu0 %v257
        %259 = vmatprep.subr.mxu0 0.0
        %260 = vmatpush2.msra.mxu0 0.0
        %261 = vmatprep.subr.mxu0 0.0
        %262 = vmatpush2.msra.mxu0 0.0
        %263 = vmatprep.subr.mxu0 0.0
        %264 = vmatpush2.msra.mxu0 0.0
        %265 = vmatprep.subr.mxu0 0.0
        %266 = vmatpush2.msra.mxu0 0.0
        %267 = vmatprep.subr.mxu0 0.0
        %268 = vmatpush2.msra.mxu0 0.0
        %269 = vmatprep.subr.mxu0 0.0
        %270 = vmatpush2.msra.mxu0 0.0
        %271 = vmatprep.subr.mxu0 0.0
        %272 = vmatpush2.msra.mxu0 0.0
        %273 = vmatprep.subr.mxu0 0.0
        %274 = vmatpush2.msra.mxu0 0.0
        %275 = vmatprep.subr.mxu0 0.0
        %276 = vmatpush2.msra.mxu0 0.0
        %277 = vmatprep.subr.mxu0 0.0
        %278 = vmatpush2.msra.mxu0 0.0
        %279 = vmatprep.subr.mxu0 0.0
        %280 = vmatpush2.msra.mxu0 0.0
        %281 = vmatprep.subr.mxu0 0.0
        %282 = vmatpush2.msra.mxu0 0.0
        %283 = vmatprep.subr.mxu0 0.0
        %284 = vmatpush2.msra.mxu0 0.0
        %285 = vmatprep.subr.mxu0 0.0
        %286 = vmatpush2.msra.mxu0 0.0
        %287 = vmatprep.subr.mxu0 0.0
        %288 = vmatpush2.msra.mxu0 0.0
        %289 = vmatprep.subr.mxu0 0.0
        %290 = vmatpush2.msra.mxu0 0.0
        %291 = vmatprep.mubr.f32.mxu0 0.0
        %v292 = vand.u32 %v223, 4294901760
        %v293 = vsub.f32 %v223, %v292
        %v294 = vand.u32 %v293, 4294901760
        %v295 = vsub.f32 %v293, %v294
        %v296 = vand.u32 %v295, 4294901760
        %297 = vmatmul.mubr.f32.gmra.mxu0 %v296
        %v298 = vpop.f32.mrf.mxu0
        %v299 = vadd.f32 0.0, %v298
        %v300 = vpop.f32.mrf.mxu0
        %301 = vdwg.mxu0
        %302 = vmatprep.subr.mxu0 0.0
        %303 = vmatpush1.msra.mxu0 0.0
        %304 = vmatprep.subr.mxu0 0.0
        %305 = vmatpush1.msra.mxu0 0.0
        %306 = vmatprep.subr.mxu0 0.0
        %307 = vmatpush1.msra.mxu0 0.0
        %308 = vmatprep.subr.mxu0 0.0
        %309 = vmatpush1.msra.mxu0 0.0
        %310 = vmatprep.subr.mxu0 0.0
        %311 = vmatpush1.msra.mxu0 0.0
        %312 = vmatprep.subr.mxu0 0.0
        %313 = vmatpush1.msra.mxu0 0.0
        %314 = vmatprep.subr.mxu0 0.0
        %315 = vmatpush1.msra.mxu0 0.0
        %316 = vmatprep.subr.mxu0 0.0
        %317 = vmatpush1.msra.mxu0 0.0
        %318 = vmatprep.subr.mxu0 0.0
        %319 = vmatpush1.msra.mxu0 0.0
        %320 = vmatprep.subr.mxu0 0.0
        %321 = vmatpush1.msra.mxu0 0.0
        %322 = vmatprep.subr.mxu0 0.0
        %323 = vmatpush1.msra.mxu0 0.0
        %324 = vmatprep.subr.mxu0 0.0
        %325 = vmatpush1.msra.mxu0 0.0
        %326 = vmatprep.subr.mxu0 0.0
        %327 = vmatpush1.msra.mxu0 0.0
        %328 = vmatprep.subr.mxu0 0.0
        %329 = vmatpush1.msra.mxu0 0.0
        %330 = vmatprep.subr.mxu0 0.0
        %v331 = vand.u32 %v220, 4294901760
        %v332 = vsub.f32 %v220, %v331
        %v333 = vand.u32 %v332, 4294901760
        %v334 = vsub.f32 %v332, %v333
        %v335 = vand.u32 %v334, 4294901760
        %336 = vmatpush1.msra.mxu0 %v335
        %337 = vmatprep.subr.mxu0 0.0
        %v338 = vand.u32 %v219, 4294901760
        %v339 = vsub.f32 %v219, %v338
        %v340 = vand.u32 %v339, 4294901760
        %v341 = vsub.f32 %v339, %v340
        %v342 = vand.u32 %v341, 4294901760
        %343 = vmatpush1.msra.mxu0 %v342
        %344 = vmatprep.subr.mxu0 0.0
        %345 = vmatpush2.msra.mxu0 0.0
        %346 = vmatprep.subr.mxu0 0.0
        %347 = vmatpush2.msra.mxu0 0.0
        %348 = vmatprep.subr.mxu0 0.0
        %349 = vmatpush2.msra.mxu0 0.0
        %350 = vmatprep.subr.mxu0 0.0
        %351 = vmatpush2.msra.mxu0 0.0
        %352 = vmatprep.subr.mxu0 0.0
        %353 = vmatpush2.msra.mxu0 0.0
        %354 = vmatprep.subr.mxu0 0.0
        %355 = vmatpush2.msra.mxu0 0.0
        %356 = vmatprep.subr.mxu0 0.0
        %357 = vmatpush2.msra.mxu0 0.0
        %358 = vmatprep.subr.mxu0 0.0
        %359 = vmatpush2.msra.mxu0 0.0
        %360 = vmatprep.subr.mxu0 0.0
        %361 = vmatpush2.msra.mxu0 0.0
        %362 = vmatprep.subr.mxu0 0.0
        %363 = vmatpush2.msra.mxu0 0.0
        %364 = vmatprep.subr.mxu0 0.0
        %365 = vmatpush2.msra.mxu0 0.0
        %366 = vmatprep.subr.mxu0 0.0
        %367 = vmatpush2.msra.mxu0 0.0
        %368 = vmatprep.subr.mxu0 0.0
        %369 = vmatpush2.msra.mxu0 0.0
        %370 = vmatprep.subr.mxu0 0.0
        %371 = vmatpush2.msra.mxu0 0.0
        %372 = vmatprep.subr.mxu0 0.0
        %373 = vmatpush2.msra.mxu0 0.0
        %374 = vmatprep.subr.mxu0 0.0
        %375 = vmatpush2.msra.mxu0 0.0
        %376 = vmatprep.mubr.f32.mxu0 0.0
        %v377 = vand.u32 %v223, 4294901760
        %378 = vmatmul.mubr.f32.gmra.mxu0 %v377
        %v379 = vpop.f32.mrf.mxu0
        %v380 = vadd.f32 %v299, %v379
        %v381 = vpop.f32.mrf.mxu0
        %382 = vdwg.mxu0
        %383 = vmatprep.subr.mxu0 0.0
        %384 = vmatpush1.msra.mxu0 0.0
        %385 = vmatprep.subr.mxu0 0.0
        %386 = vmatpush1.msra.mxu0 0.0
        %387 = vmatprep.subr.mxu0 0.0
        %388 = vmatpush1.msra.mxu0 0.0
        %389 = vmatprep.subr.mxu0 0.0
        %390 = vmatpush1.msra.mxu0 0.0
        %391 = vmatprep.subr.mxu0 0.0
        %392 = vmatpush1.msra.mxu0 0.0
        %393 = vmatprep.subr.mxu0 0.0
        %394 = vmatpush1.msra.mxu0 0.0
        %395 = vmatprep.subr.mxu0 0.0
        %396 = vmatpush1.msra.mxu0 0.0
        %397 = vmatprep.subr.mxu0 0.0
        %398 = vmatpush1.msra.mxu0 0.0
        %399 = vmatprep.subr.mxu0 0.0
        %400 = vmatpush1.msra.mxu0 0.0
        %401 = vmatprep.subr.mxu0 0.0
        %402 = vmatpush1.msra.mxu0 0.0
        %403 = vmatprep.subr.mxu0 0.0
        %404 = vmatpush1.msra.mxu0 0.0
        %405 = vmatprep.subr.mxu0 0.0
        %406 = vmatpush1.msra.mxu0 0.0
        %407 = vmatprep.subr.mxu0 0.0
        %408 = vmatpush1.msra.mxu0 0.0
        %409 = vmatprep.subr.mxu0 0.0
        %410 = vmatpush1.msra.mxu0 0.0
        %411 = vmatprep.subr.mxu0 0.0
        %v412 = vand.u32 %v220, 4294901760
        %v413 = vsub.f32 %v220, %v412
        %414 = vmatpush1.msra.mxu0 %v413
        %415 = vmatprep.subr.mxu0 0.0
        %v416 = vand.u32 %v219, 4294901760
        %v417 = vsub.f32 %v219, %v416
        %418 = vmatpush1.msra.mxu0 %v417
        %419 = vmatprep.subr.mxu0 0.0
        %420 = vmatpush2.msra.mxu0 0.0
        %421 = vmatprep.subr.mxu0 0.0
        %422 = vmatpush2.msra.mxu0 0.0
        %423 = vmatprep.subr.mxu0 0.0
        %424 = vmatpush2.msra.mxu0 0.0
        %425 = vmatprep.subr.mxu0 0.0
        %426 = vmatpush2.msra.mxu0 0.0
        %427 = vmatprep.subr.mxu0 0.0
        %428 = vmatpush2.msra.mxu0 0.0
        %429 = vmatprep.subr.mxu0 0.0
        %430 = vmatpush2.msra.mxu0 0.0
        %431 = vmatprep.subr.mxu0 0.0
        %432 = vmatpush2.msra.mxu0 0.0
        %433 = vmatprep.subr.mxu0 0.0
        %434 = vmatpush2.msra.mxu0 0.0
        %435 = vmatprep.subr.mxu0 0.0
        %436 = vmatpush2.msra.mxu0 0.0
        %437 = vmatprep.subr.mxu0 0.0
        %438 = vmatpush2.msra.mxu0 0.0
        %439 = vmatprep.subr.mxu0 0.0
        %440 = vmatpush2.msra.mxu0 0.0
        %441 = vmatprep.subr.mxu0 0.0
        %442 = vmatpush2.msra.mxu0 0.0
        %443 = vmatprep.subr.mxu0 0.0
        %444 = vmatpush2.msra.mxu0 0.0
        %445 = vmatprep.subr.mxu0 0.0
        %446 = vmatpush2.msra.mxu0 0.0
        %447 = vmatprep.subr.mxu0 0.0
        %448 = vmatpush2.msra.mxu0 0.0
        %449 = vmatprep.subr.mxu0 0.0
        %450 = vmatpush2.msra.mxu0 0.0
        %451 = vmatprep.mubr.f32.mxu0 0.0
        %v452 = vand.u32 %v223, 4294901760
        %v453 = vsub.f32 %v223, %v452
        %454 = vmatmul.mubr.f32.gmra.mxu0 %v453
        %v455 = vpop.f32.mrf.mxu0
        %v456 = vadd.f32 %v380, %v455
        %v457 = vpop.f32.mrf.mxu0
        %458 = vdwg.mxu0
        %459 = vmatprep.subr.mxu0 0.0
        %460 = vmatpush1.msra.mxu0 0.0
        %461 = vmatprep.subr.mxu0 0.0
        %462 = vmatpush1.msra.mxu0 0.0
        %463 = vmatprep.subr.mxu0 0.0
        %464 = vmatpush1.msra.mxu0 0.0
        %465 = vmatprep.subr.mxu0 0.0
        %466 = vmatpush1.msra.mxu0 0.0
        %467 = vmatprep.subr.mxu0 0.0
        %468 = vmatpush1.msra.mxu0 0.0
        %469 = vmatprep.subr.mxu0 0.0
        %470 = vmatpush1.msra.mxu0 0.0
        %471 = vmatprep.subr.mxu0 0.0
        %472 = vmatpush1.msra.mxu0 0.0
        %473 = vmatprep.subr.mxu0 0.0
        %474 = vmatpush1.msra.mxu0 0.0
        %475 = vmatprep.subr.mxu0 0.0
        %476 = vmatpush1.msra.mxu0 0.0
        %477 = vmatprep.subr.mxu0 0.0
        %478 = vmatpush1.msra.mxu0 0.0
        %479 = vmatprep.subr.mxu0 0.0
        %480 = vmatpush1.msra.mxu0 0.0
        %481 = vmatprep.subr.mxu0 0.0
        %482 = vmatpush1.msra.mxu0 0.0
        %483 = vmatprep.subr.mxu0 0.0
        %484 = vmatpush1.msra.mxu0 0.0
        %485 = vmatprep.subr.mxu0 0.0
        %486 = vmatpush1.msra.mxu0 0.0
        %487 = vmatprep.subr.mxu0 0.0
        %v488 = vand.u32 %v220, 4294901760
        %489 = vmatpush1.msra.mxu0 %v488
        %490 = vmatprep.subr.mxu0 0.0
        %v491 = vand.u32 %v219, 4294901760
        %492 = vmatpush1.msra.mxu0 %v491
        %493 = vmatprep.subr.mxu0 0.0
        %494 = vmatpush2.msra.mxu0 0.0
        %495 = vmatprep.subr.mxu0 0.0
        %496 = vmatpush2.msra.mxu0 0.0
        %497 = vmatprep.subr.mxu0 0.0
        %498 = vmatpush2.msra.mxu0 0.0
        %499 = vmatprep.subr.mxu0 0.0
        %500 = vmatpush2.msra.mxu0 0.0
        %501 = vmatprep.subr.mxu0 0.0
        %502 = vmatpush2.msra.mxu0 0.0
        %503 = vmatprep.subr.mxu0 0.0
        %504 = vmatpush2.msra.mxu0 0.0
        %505 = vmatprep.subr.mxu0 0.0
        %506 = vmatpush2.msra.mxu0 0.0
        %507 = vmatprep.subr.mxu0 0.0
        %508 = vmatpush2.msra.mxu0 0.0
        %509 = vmatprep.subr.mxu0 0.0
        %510 = vmatpush2.msra.mxu0 0.0
        %511 = vmatprep.subr.mxu0 0.0
        %512 = vmatpush2.msra.mxu0 0.0
        %513 = vmatprep.subr.mxu0 0.0
        %514 = vmatpush2.msra.mxu0 0.0
        %515 = vmatprep.subr.mxu0 0.0
        %516 = vmatpush2.msra.mxu0 0.0
        %517 = vmatprep.subr.mxu0 0.0
        %518 = vmatpush2.msra.mxu0 0.0
        %519 = vmatprep.subr.mxu0 0.0
        %520 = vmatpush2.msra.mxu0 0.0
        %521 = vmatprep.subr.mxu0 0.0
        %522 = vmatpush2.msra.mxu0 0.0
        %523 = vmatprep.subr.mxu0 0.0
        %524 = vmatpush2.msra.mxu0 0.0
        %525 = vmatprep.mubr.f32.mxu0 0.0
        %v526 = vand.u32 %v223, 4294901760
        %v527 = vsub.f32 %v223, %v526
        %v528 = vand.u32 %v527, 4294901760
        %529 = vmatmul.mubr.f32.gmra.mxu0 %v528
        %v530 = vpop.f32.mrf.mxu0
        %v531 = vadd.f32 %v456, %v530
        %v532 = vpop.f32.mrf.mxu0
        %533 = vdwg.mxu0
        %534 = vmatprep.subr.mxu0 0.0
        %535 = vmatpush1.msra.mxu0 0.0
        %536 = vmatprep.subr.mxu0 0.0
        %537 = vmatpush1.msra.mxu0 0.0
        %538 = vmatprep.subr.mxu0 0.0
        %539 = vmatpush1.msra.mxu0 0.0
        %540 = vmatprep.subr.mxu0 0.0
        %541 = vmatpush1.msra.mxu0 0.0
        %542 = vmatprep.subr.mxu0 0.0
        %543 = vmatpush1.msra.mxu0 0.0
        %544 = vmatprep.subr.mxu0 0.0
        %545 = vmatpush1.msra.mxu0 0.0
        %546 = vmatprep.subr.mxu0 0.0
        %547 = vmatpush1.msra.mxu0 0.0
        %548 = vmatprep.subr.mxu0 0.0
        %549 = vmatpush1.msra.mxu0 0.0
        %550 = vmatprep.subr.mxu0 0.0
        %551 = vmatpush1.msra.mxu0 0.0
        %552 = vmatprep.subr.mxu0 0.0
        %553 = vmatpush1.msra.mxu0 0.0
        %554 = vmatprep.subr.mxu0 0.0
        %555 = vmatpush1.msra.mxu0 0.0
        %556 = vmatprep.subr.mxu0 0.0
        %557 = vmatpush1.msra.mxu0 0.0
        %558 = vmatprep.subr.mxu0 0.0
        %559 = vmatpush1.msra.mxu0 0.0
        %560 = vmatprep.subr.mxu0 0.0
        %561 = vmatpush1.msra.mxu0 0.0
        %562 = vmatprep.subr.mxu0 0.0
        %v563 = vand.u32 %v220, 4294901760
        %v564 = vsub.f32 %v220, %v563
        %v565 = vand.u32 %v564, 4294901760
        %566 = vmatpush1.msra.mxu0 %v565
        %567 = vmatprep.subr.mxu0 0.0
        %v568 = vand.u32 %v219, 4294901760
        %v569 = vsub.f32 %v219, %v568
        %v570 = vand.u32 %v569, 4294901760
        %571 = vmatpush1.msra.mxu0 %v570
        %572 = vmatprep.subr.mxu0 0.0
        %573 = vmatpush2.msra.mxu0 0.0
        %574 = vmatprep.subr.mxu0 0.0
        %575 = vmatpush2.msra.mxu0 0.0
        %576 = vmatprep.subr.mxu0 0.0
        %577 = vmatpush2.msra.mxu0 0.0
        %578 = vmatprep.subr.mxu0 0.0
        %579 = vmatpush2.msra.mxu0 0.0
        %580 = vmatprep.subr.mxu0 0.0
        %581 = vmatpush2.msra.mxu0 0.0
        %582 = vmatprep.subr.mxu0 0.0
        %583 = vmatpush2.msra.mxu0 0.0
        %584 = vmatprep.subr.mxu0 0.0
        %585 = vmatpush2.msra.mxu0 0.0
        %586 = vmatprep.subr.mxu0 0.0
        %587 = vmatpush2.msra.mxu0 0.0
        %588 = vmatprep.subr.mxu0 0.0
        %589 = vmatpush2.msra.mxu0 0.0
        %590 = vmatprep.subr.mxu0 0.0
        %591 = vmatpush2.msra.mxu0 0.0
        %592 = vmatprep.subr.mxu0 0.0
        %593 = vmatpush2.msra.mxu0 0.0
        %594 = vmatprep.subr.mxu0 0.0
        %595 = vmatpush2.msra.mxu0 0.0
        %596 = vmatprep.subr.mxu0 0.0
        %597 = vmatpush2.msra.mxu0 0.0
        %598 = vmatprep.subr.mxu0 0.0
        %599 = vmatpush2.msra.mxu0 0.0
        %600 = vmatprep.subr.mxu0 0.0
        %601 = vmatpush2.msra.mxu0 0.0
        %602 = vmatprep.subr.mxu0 0.0
        %603 = vmatpush2.msra.mxu0 0.0
        %604 = vmatprep.mubr.f32.mxu0 0.0
        %v605 = vand.u32 %v223, 4294901760
        %606 = vmatmul.mubr.f32.gmra.mxu0 %v605
        %v607 = vpop.f32.mrf.mxu0
        %v608 = vadd.f32 %v531, %v607
        %v609 = vpop.f32.mrf.mxu0
        %610 = vdwg.mxu0
        %611 = vmatprep.subr.mxu0 0.0
        %612 = vmatpush1.msra.mxu0 0.0
        %613 = vmatprep.subr.mxu0 0.0
        %614 = vmatpush1.msra.mxu0 0.0
        %615 = vmatprep.subr.mxu0 0.0
        %616 = vmatpush1.msra.mxu0 0.0
        %617 = vmatprep.subr.mxu0 0.0
        %618 = vmatpush1.msra.mxu0 0.0
        %619 = vmatprep.subr.mxu0 0.0
        %620 = vmatpush1.msra.mxu0 0.0
        %621 = vmatprep.subr.mxu0 0.0
        %622 = vmatpush1.msra.mxu0 0.0
        %623 = vmatprep.subr.mxu0 0.0
        %624 = vmatpush1.msra.mxu0 0.0
        %625 = vmatprep.subr.mxu0 0.0
        %626 = vmatpush1.msra.mxu0 0.0
        %627 = vmatprep.subr.mxu0 0.0
        %628 = vmatpush1.msra.mxu0 0.0
        %629 = vmatprep.subr.mxu0 0.0
        %630 = vmatpush1.msra.mxu0 0.0
        %631 = vmatprep.subr.mxu0 0.0
        %632 = vmatpush1.msra.mxu0 0.0
        %633 = vmatprep.subr.mxu0 0.0
        %634 = vmatpush1.msra.mxu0 0.0
        %635 = vmatprep.subr.mxu0 0.0
        %636 = vmatpush1.msra.mxu0 0.0
        %637 = vmatprep.subr.mxu0 0.0
        %638 = vmatpush1.msra.mxu0 0.0
        %639 = vmatprep.subr.mxu0 0.0
        %v640 = vand.u32 %v220, 4294901760
        %641 = vmatpush1.msra.mxu0 %v640
        %642 = vmatprep.subr.mxu0 0.0
        %v643 = vand.u32 %v219, 4294901760
        %644 = vmatpush1.msra.mxu0 %v643
        %645 = vmatprep.subr.mxu0 0.0
        %646 = vmatpush2.msra.mxu0 0.0
        %647 = vmatprep.subr.mxu0 0.0
        %648 = vmatpush2.msra.mxu0 0.0
        %649 = vmatprep.subr.mxu0 0.0
        %650 = vmatpush2.msra.mxu0 0.0
        %651 = vmatprep.subr.mxu0 0.0
        %652 = vmatpush2.msra.mxu0 0.0
        %653 = vmatprep.subr.mxu0 0.0
        %654 = vmatpush2.msra.mxu0 0.0
        %655 = vmatprep.subr.mxu0 0.0
        %656 = vmatpush2.msra.mxu0 0.0
        %657 = vmatprep.subr.mxu0 0.0
        %658 = vmatpush2.msra.mxu0 0.0
        %659 = vmatprep.subr.mxu0 0.0
        %660 = vmatpush2.msra.mxu0 0.0
        %661 = vmatprep.subr.mxu0 0.0
        %662 = vmatpush2.msra.mxu0 0.0
        %663 = vmatprep.subr.mxu0 0.0
        %664 = vmatpush2.msra.mxu0 0.0
        %665 = vmatprep.subr.mxu0 0.0
        %666 = vmatpush2.msra.mxu0 0.0
        %667 = vmatprep.subr.mxu0 0.0
        %668 = vmatpush2.msra.mxu0 0.0
        %669 = vmatprep.subr.mxu0 0.0
        %670 = vmatpush2.msra.mxu0 0.0
        %671 = vmatprep.subr.mxu0 0.0
        %672 = vmatpush2.msra.mxu0 0.0
        %673 = vmatprep.subr.mxu0 0.0
        %674 = vmatpush2.msra.mxu0 0.0
        %675 = vmatprep.subr.mxu0 0.0
        %676 = vmatpush2.msra.mxu0 0.0
        %677 = vmatprep.mubr.f32.mxu0 0.0
        %v678 = vand.u32 %v223, 4294901760
        %679 = vmatmul.mubr.f32.gmra.mxu0 %v678
        %v680 = vpop.f32.mrf.mxu0
        %v681 = vadd.f32 %v608, %v680
        %v682 = vpop.f32.mrf.mxu0
        %683 = vdwg.mxu0
        %v684 = vrcp.pop %v681
        %v685 = vmul.f32 %v681, %v684
        %v686 = vsub.f32 2.0, %v685
        %v687 = vmul.f32 %v684, %v686
        %v689 = vrot.slane %v687, 4
        %v691 = vmul.f32 %v681, %v689
        %692 = vst [vmem:[%s148] sm:$0xf] %v691
      $region36: #{idw_warp.1} parent=31 // pred_fallthru
        _
      %p693 = scmp.le.f32.partialorder %s208, 1.1754944e-38
      // Predicated region
      $region37: #{idw_warp.1} parent=31 // pred_check
        %p694 = pneg %p693
      $region38: #{idw_warp.1} parent=31 // pred_check_branch
        %696 = sbr.rel (%p694) target = $region40
      $region39: #{idw_warp.1} parent=31 // pred_region
        %vm697 = vcmp.le.f32.partialorder %v196, 1.1754944e-38
        %vm698 = vcmp.le.f32.partialorder %v197, 1.1754944e-38
        %v699 = vsel %vm697, 1, 0
        %v700 = vsel %vm698, 1, 0
        %v701 = vcvt.s32.f32 %v699
        %v702 = vcvt.s32.f32 %v700
        %v703 = vsel %vm697, 1.0, %v196
        %v704 = vsel %vm698, 1.0, %v197
        %v705 = vrcp.pop %v703
        %v706 = vrcp.pop %v704
        %v707 = vmul.f32 %v703, %v705
        %v708 = vmul.f32 %v704, %v706
        %v709 = vsub.f32 2.0, %v707
        %v710 = vsub.f32 2.0, %v708
        %v711 = vmul.f32 %v705, %v709
        %v712 = vmul.f32 %v706, %v710
        %v713 = vsel %vm697, 0.0, %v711
        %v714 = vsel %vm698, 0.0, %v712
        %vm715 = vcmask 130048
        %v717 = vsel %vm715, %v198, 0
        %719 = vmatprep.subr.mxu0 0.0
        %720 = vmatpush1.msra.mxu0 0.0
        %721 = vmatprep.subr.mxu0 0.0
        %722 = vmatpush1.msra.mxu0 0.0
        %723 = vmatprep.subr.mxu0 0.0
        %724 = vmatpush1.msra.mxu0 0.0
        %725 = vmatprep.subr.mxu0 0.0
        %726 = vmatpush1.msra.mxu0 0.0
        %727 = vmatprep.subr.mxu0 0.0
        %728 = vmatpush1.msra.mxu0 0.0
        %729 = vmatprep.subr.mxu0 0.0
        %730 = vmatpush1.msra.mxu0 0.0
        %731 = vmatprep.subr.mxu0 0.0
        %732 = vmatpush1.msra.mxu0 0.0
        %733 = vmatprep.subr.mxu0 0.0
        %734 = vmatpush1.msra.mxu0 0.0
        %735 = vmatprep.subr.mxu0 0.0
        %736 = vmatpush1.msra.mxu0 0.0
        %737 = vmatprep.subr.mxu0 0.0
        %738 = vmatpush1.msra.mxu0 0.0
        %739 = vmatprep.subr.mxu0 0.0
        %740 = vmatpush1.msra.mxu0 0.0
        %741 = vmatprep.subr.mxu0 0.0
        %742 = vmatpush1.msra.mxu0 0.0
        %743 = vmatprep.subr.mxu0 0.0
        %744 = vmatpush1.msra.mxu0 0.0
        %745 = vmatprep.subr.mxu0 0.0
        %746 = vmatpush1.msra.mxu0 0.0
        %747 = vmatprep.subr.mxu0 0.0
        %v748 = vand.u32 %v714, 4294901760
        %749 = vmatpush1.msra.mxu0 %v748
        %750 = vmatprep.subr.mxu0 0.0
        %v751 = vand.u32 %v713, 4294901760
        %752 = vmatpush1.msra.mxu0 %v751
        %753 = vmatprep.subr.mxu0 0.0
        %754 = vmatpush2.msra.mxu0 0.0
        %755 = vmatprep.subr.mxu0 0.0
        %756 = vmatpush2.msra.mxu0 0.0
        %757 = vmatprep.subr.mxu0 0.0
        %758 = vmatpush2.msra.mxu0 0.0
        %759 = vmatprep.subr.mxu0 0.0
        %760 = vmatpush2.msra.mxu0 0.0
        %761 = vmatprep.subr.mxu0 0.0
        %762 = vmatpush2.msra.mxu0 0.0
        %763 = vmatprep.subr.mxu0 0.0
        %764 = vmatpush2.msra.mxu0 0.0
        %765 = vmatprep.subr.mxu0 0.0
        %766 = vmatpush2.msra.mxu0 0.0
        %767 = vmatprep.subr.mxu0 0.0
        %768 = vmatpush2.msra.mxu0 0.0
        %769 = vmatprep.subr.mxu0 0.0
        %770 = vmatpush2.msra.mxu0 0.0
        %771 = vmatprep.subr.mxu0 0.0
        %772 = vmatpush2.msra.mxu0 0.0
        %773 = vmatprep.subr.mxu0 0.0
        %774 = vmatpush2.msra.mxu0 0.0
        %775 = vmatprep.subr.mxu0 0.0
        %776 = vmatpush2.msra.mxu0 0.0
        %777 = vmatprep.subr.mxu0 0.0
        %778 = vmatpush2.msra.mxu0 0.0
        %779 = vmatprep.subr.mxu0 0.0
        %780 = vmatpush2.msra.mxu0 0.0
        %781 = vmatprep.subr.mxu0 0.0
        %782 = vmatpush2.msra.mxu0 0.0
        %783 = vmatprep.subr.mxu0 0.0
        %784 = vmatpush2.msra.mxu0 0.0
        %785 = vmatprep.mubr.f32.mxu0 0.0
        %v786 = vand.u32 %v717, 4294901760
        %v787 = vsub.f32 %v717, %v786
        %v788 = vand.u32 %v787, 4294901760
        %v789 = vsub.f32 %v787, %v788
        %v790 = vand.u32 %v789, 4294901760
        %791 = vmatmul.mubr.f32.gmra.mxu0 %v790
        %v792 = vpop.f32.mrf.mxu0
        %v793 = vadd.f32 0.0, %v792
        %v794 = vpop.f32.mrf.mxu0
        %795 = vdwg.mxu0
        %796 = vmatprep.subr.mxu0 0.0
        %797 = vmatpush1.msra.mxu0 0.0
        %798 = vmatprep.subr.mxu0 0.0
        %799 = vmatpush1.msra.mxu0 0.0
        %800 = vmatprep.subr.mxu0 0.0
        %801 = vmatpush1.msra.mxu0 0.0
        %802 = vmatprep.subr.mxu0 0.0
        %803 = vmatpush1.msra.mxu0 0.0
        %804 = vmatprep.subr.mxu0 0.0
        %805 = vmatpush1.msra.mxu0 0.0
        %806 = vmatprep.subr.mxu0 0.0
        %807 = vmatpush1.msra.mxu0 0.0
        %808 = vmatprep.subr.mxu0 0.0
        %809 = vmatpush1.msra.mxu0 0.0
        %810 = vmatprep.subr.mxu0 0.0
        %811 = vmatpush1.msra.mxu0 0.0
        %812 = vmatprep.subr.mxu0 0.0
        %813 = vmatpush1.msra.mxu0 0.0
        %814 = vmatprep.subr.mxu0 0.0
        %815 = vmatpush1.msra.mxu0 0.0
        %816 = vmatprep.subr.mxu0 0.0
        %817 = vmatpush1.msra.mxu0 0.0
        %818 = vmatprep.subr.mxu0 0.0
        %819 = vmatpush1.msra.mxu0 0.0
        %820 = vmatprep.subr.mxu0 0.0
        %821 = vmatpush1.msra.mxu0 0.0
        %822 = vmatprep.subr.mxu0 0.0
        %823 = vmatpush1.msra.mxu0 0.0
        %824 = vmatprep.subr.mxu0 0.0
        %v825 = vand.u32 %v714, 4294901760
        %v826 = vsub.f32 %v714, %v825
        %v827 = vand.u32 %v826, 4294901760
        %v828 = vsub.f32 %v826, %v827
        %v829 = vand.u32 %v828, 4294901760
        %830 = vmatpush1.msra.mxu0 %v829
        %831 = vmatprep.subr.mxu0 0.0
        %v832 = vand.u32 %v713, 4294901760
        %v833 = vsub.f32 %v713, %v832
        %v834 = vand.u32 %v833, 4294901760
        %v835 = vsub.f32 %v833, %v834
        %v836 = vand.u32 %v835, 4294901760
        %837 = vmatpush1.msra.mxu0 %v836
        %838 = vmatprep.subr.mxu0 0.0
        %839 = vmatpush2.msra.mxu0 0.0
        %840 = vmatprep.subr.mxu0 0.0
        %841 = vmatpush2.msra.mxu0 0.0
        %842 = vmatprep.subr.mxu0 0.0
        %843 = vmatpush2.msra.mxu0 0.0
        %844 = vmatprep.subr.mxu0 0.0
        %845 = vmatpush2.msra.mxu0 0.0
        %846 = vmatprep.subr.mxu0 0.0
        %847 = vmatpush2.msra.mxu0 0.0
        %848 = vmatprep.subr.mxu0 0.0
        %849 = vmatpush2.msra.mxu0 0.0
        %850 = vmatprep.subr.mxu0 0.0
        %851 = vmatpush2.msra.mxu0 0.0
        %852 = vmatprep.subr.mxu0 0.0
        %853 = vmatpush2.msra.mxu0 0.0
        %854 = vmatprep.subr.mxu0 0.0
        %855 = vmatpush2.msra.mxu0 0.0
        %856 = vmatprep.subr.mxu0 0.0
        %857 = vmatpush2.msra.mxu0 0.0
        %858 = vmatprep.subr.mxu0 0.0
        %859 = vmatpush2.msra.mxu0 0.0
        %860 = vmatprep.subr.mxu0 0.0
        %861 = vmatpush2.msra.mxu0 0.0
        %862 = vmatprep.subr.mxu0 0.0
        %863 = vmatpush2.msra.mxu0 0.0
        %864 = vmatprep.subr.mxu0 0.0
        %865 = vmatpush2.msra.mxu0 0.0
        %866 = vmatprep.subr.mxu0 0.0
        %867 = vmatpush2.msra.mxu0 0.0
        %868 = vmatprep.subr.mxu0 0.0
        %869 = vmatpush2.msra.mxu0 0.0
        %870 = vmatprep.mubr.f32.mxu0 0.0
        %v871 = vand.u32 %v717, 4294901760
        %872 = vmatmul.mubr.f32.gmra.mxu0 %v871
        %v873 = vpop.f32.mrf.mxu0
        %v874 = vadd.f32 %v793, %v873
        %v875 = vpop.f32.mrf.mxu0
        %876 = vdwg.mxu0
        %877 = vmatprep.subr.mxu0 0.0
        %878 = vmatpush1.msra.mxu0 0.0
        %879 = vmatprep.subr.mxu0 0.0
        %880 = vmatpush1.msra.mxu0 0.0
        %881 = vmatprep.subr.mxu0 0.0
        %882 = vmatpush1.msra.mxu0 0.0
        %883 = vmatprep.subr.mxu0 0.0
        %884 = vmatpush1.msra.mxu0 0.0
        %885 = vmatprep.subr.mxu0 0.0
        %886 = vmatpush1.msra.mxu0 0.0
        %887 = vmatprep.subr.mxu0 0.0
        %888 = vmatpush1.msra.mxu0 0.0
        %889 = vmatprep.subr.mxu0 0.0
        %890 = vmatpush1.msra.mxu0 0.0
        %891 = vmatprep.subr.mxu0 0.0
        %892 = vmatpush1.msra.mxu0 0.0
        %893 = vmatprep.subr.mxu0 0.0
        %894 = vmatpush1.msra.mxu0 0.0
        %895 = vmatprep.subr.mxu0 0.0
        %896 = vmatpush1.msra.mxu0 0.0
        %897 = vmatprep.subr.mxu0 0.0
        %898 = vmatpush1.msra.mxu0 0.0
        %899 = vmatprep.subr.mxu0 0.0
        %900 = vmatpush1.msra.mxu0 0.0
        %901 = vmatprep.subr.mxu0 0.0
        %902 = vmatpush1.msra.mxu0 0.0
        %903 = vmatprep.subr.mxu0 0.0
        %904 = vmatpush1.msra.mxu0 0.0
        %905 = vmatprep.subr.mxu0 0.0
        %v906 = vand.u32 %v714, 4294901760
        %v907 = vsub.f32 %v714, %v906
        %908 = vmatpush1.msra.mxu0 %v907
        %909 = vmatprep.subr.mxu0 0.0
        %v910 = vand.u32 %v713, 4294901760
        %v911 = vsub.f32 %v713, %v910
        %912 = vmatpush1.msra.mxu0 %v911
        %913 = vmatprep.subr.mxu0 0.0
        %914 = vmatpush2.msra.mxu0 0.0
        %915 = vmatprep.subr.mxu0 0.0
        %916 = vmatpush2.msra.mxu0 0.0
        %917 = vmatprep.subr.mxu0 0.0
        %918 = vmatpush2.msra.mxu0 0.0
        %919 = vmatprep.subr.mxu0 0.0
        %920 = vmatpush2.msra.mxu0 0.0
        %921 = vmatprep.subr.mxu0 0.0
        %922 = vmatpush2.msra.mxu0 0.0
        %923 = vmatprep.subr.mxu0 0.0
        %924 = vmatpush2.msra.mxu0 0.0
        %925 = vmatprep.subr.mxu0 0.0
        %926 = vmatpush2.msra.mxu0 0.0
        %927 = vmatprep.subr.mxu0 0.0
        %928 = vmatpush2.msra.mxu0 0.0
        %929 = vmatprep.subr.mxu0 0.0
        %930 = vmatpush2.msra.mxu0 0.0
        %931 = vmatprep.subr.mxu0 0.0
        %932 = vmatpush2.msra.mxu0 0.0
        %933 = vmatprep.subr.mxu0 0.0
        %934 = vmatpush2.msra.mxu0 0.0
        %935 = vmatprep.subr.mxu0 0.0
        %936 = vmatpush2.msra.mxu0 0.0
        %937 = vmatprep.subr.mxu0 0.0
        %938 = vmatpush2.msra.mxu0 0.0
        %939 = vmatprep.subr.mxu0 0.0
        %940 = vmatpush2.msra.mxu0 0.0
        %941 = vmatprep.subr.mxu0 0.0
        %942 = vmatpush2.msra.mxu0 0.0
        %943 = vmatprep.subr.mxu0 0.0
        %944 = vmatpush2.msra.mxu0 0.0
        %945 = vmatprep.mubr.f32.mxu0 0.0
        %v946 = vand.u32 %v717, 4294901760
        %v947 = vsub.f32 %v717, %v946
        %948 = vmatmul.mubr.f32.gmra.mxu0 %v947
        %v949 = vpop.f32.mrf.mxu0
        %v950 = vadd.f32 %v874, %v949
        %v951 = vpop.f32.mrf.mxu0
        %952 = vdwg.mxu0
        %953 = vmatprep.subr.mxu0 0.0
        %954 = vmatpush1.msra.mxu0 0.0
        %955 = vmatprep.subr.mxu0 0.0
        %956 = vmatpush1.msra.mxu0 0.0
        %957 = vmatprep.subr.mxu0 0.0
        %958 = vmatpush1.msra.mxu0 0.0
        %959 = vmatprep.subr.mxu0 0.0
        %960 = vmatpush1.msra.mxu0 0.0
        %961 = vmatprep.subr.mxu0 0.0
        %962 = vmatpush1.msra.mxu0 0.0
        %963 = vmatprep.subr.mxu0 0.0
        %964 = vmatpush1.msra.mxu0 0.0
        %965 = vmatprep.subr.mxu0 0.0
        %966 = vmatpush1.msra.mxu0 0.0
        %967 = vmatprep.subr.mxu0 0.0
        %968 = vmatpush1.msra.mxu0 0.0
        %969 = vmatprep.subr.mxu0 0.0
        %970 = vmatpush1.msra.mxu0 0.0
        %971 = vmatprep.subr.mxu0 0.0
        %972 = vmatpush1.msra.mxu0 0.0
        %973 = vmatprep.subr.mxu0 0.0
        %974 = vmatpush1.msra.mxu0 0.0
        %975 = vmatprep.subr.mxu0 0.0
        %976 = vmatpush1.msra.mxu0 0.0
        %977 = vmatprep.subr.mxu0 0.0
        %978 = vmatpush1.msra.mxu0 0.0
        %979 = vmatprep.subr.mxu0 0.0
        %980 = vmatpush1.msra.mxu0 0.0
        %981 = vmatprep.subr.mxu0 0.0
        %v982 = vand.u32 %v714, 4294901760
        %983 = vmatpush1.msra.mxu0 %v982
        %984 = vmatprep.subr.mxu0 0.0
        %v985 = vand.u32 %v713, 4294901760
        %986 = vmatpush1.msra.mxu0 %v985
        %987 = vmatprep.subr.mxu0 0.0
        %988 = vmatpush2.msra.mxu0 0.0
        %989 = vmatprep.subr.mxu0 0.0
        %990 = vmatpush2.msra.mxu0 0.0
        %991 = vmatprep.subr.mxu0 0.0
        %992 = vmatpush2.msra.mxu0 0.0
        %993 = vmatprep.subr.mxu0 0.0
        %994 = vmatpush2.msra.mxu0 0.0
        %995 = vmatprep.subr.mxu0 0.0
        %996 = vmatpush2.msra.mxu0 0.0
        %997 = vmatprep.subr.mxu0 0.0
        %998 = vmatpush2.msra.mxu0 0.0
        %999 = vmatprep.subr.mxu0 0.0
        %1000 = vmatpush2.msra.mxu0 0.0
        %1001 = vmatprep.subr.mxu0 0.0
        %1002 = vmatpush2.msra.mxu0 0.0
        %1003 = vmatprep.subr.mxu0 0.0
        %1004 = vmatpush2.msra.mxu0 0.0
        %1005 = vmatprep.subr.mxu0 0.0
        %1006 = vmatpush2.msra.mxu0 0.0
        %1007 = vmatprep.subr.mxu0 0.0
        %1008 = vmatpush2.msra.mxu0 0.0
        %1009 = vmatprep.subr.mxu0 0.0
        %1010 = vmatpush2.msra.mxu0 0.0
        %1011 = vmatprep.subr.mxu0 0.0
        %1012 = vmatpush2.msra.mxu0 0.0
        %1013 = vmatprep.subr.mxu0 0.0
        %1014 = vmatpush2.msra.mxu0 0.0
        %1015 = vmatprep.subr.mxu0 0.0
        %1016 = vmatpush2.msra.mxu0 0.0
        %1017 = vmatprep.subr.mxu0 0.0
        %1018 = vmatpush2.msra.mxu0 0.0
        %1019 = vmatprep.mubr.f32.mxu0 0.0
        %v1020 = vand.u32 %v717, 4294901760
        %v1021 = vsub.f32 %v717, %v1020
        %v1022 = vand.u32 %v1021, 4294901760
        %1023 = vmatmul.mubr.f32.gmra.mxu0 %v1022
        %v1024 = vpop.f32.mrf.mxu0
        %v1025 = vadd.f32 %v950, %v1024
        %v1026 = vpop.f32.mrf.mxu0
        %1027 = vdwg.mxu0
        %1028 = vmatprep.subr.mxu0 0.0
        %1029 = vmatpush1.msra.mxu0 0.0
        %1030 = vmatprep.subr.mxu0 0.0
        %1031 = vmatpush1.msra.mxu0 0.0
        %1032 = vmatprep.subr.mxu0 0.0
        %1033 = vmatpush1.msra.mxu0 0.0
        %1034 = vmatprep.subr.mxu0 0.0
        %1035 = vmatpush1.msra.mxu0 0.0
        %1036 = vmatprep.subr.mxu0 0.0
        %1037 = vmatpush1.msra.mxu0 0.0
        %1038 = vmatprep.subr.mxu0 0.0
        %1039 = vmatpush1.msra.mxu0 0.0
        %1040 = vmatprep.subr.mxu0 0.0
        %1041 = vmatpush1.msra.mxu0 0.0
        %1042 = vmatprep.subr.mxu0 0.0
        %1043 = vmatpush1.msra.mxu0 0.0
        %1044 = vmatprep.subr.mxu0 0.0
        %1045 = vmatpush1.msra.mxu0 0.0
        %1046 = vmatprep.subr.mxu0 0.0
        %1047 = vmatpush1.msra.mxu0 0.0
        %1048 = vmatprep.subr.mxu0 0.0
        %1049 = vmatpush1.msra.mxu0 0.0
        %1050 = vmatprep.subr.mxu0 0.0
        %1051 = vmatpush1.msra.mxu0 0.0
        %1052 = vmatprep.subr.mxu0 0.0
        %1053 = vmatpush1.msra.mxu0 0.0
        %1054 = vmatprep.subr.mxu0 0.0
        %1055 = vmatpush1.msra.mxu0 0.0
        %1056 = vmatprep.subr.mxu0 0.0
        %v1057 = vand.u32 %v714, 4294901760
        %v1058 = vsub.f32 %v714, %v1057
        %v1059 = vand.u32 %v1058, 4294901760
        %1060 = vmatpush1.msra.mxu0 %v1059
        %1061 = vmatprep.subr.mxu0 0.0
        %v1062 = vand.u32 %v713, 4294901760
        %v1063 = vsub.f32 %v713, %v1062
        %v1064 = vand.u32 %v1063, 4294901760
        %1065 = vmatpush1.msra.mxu0 %v1064
        %1066 = vmatprep.subr.mxu0 0.0
        %1067 = vmatpush2.msra.mxu0 0.0
        %1068 = vmatprep.subr.mxu0 0.0
        %1069 = vmatpush2.msra.mxu0 0.0
        %1070 = vmatprep.subr.mxu0 0.0
        %1071 = vmatpush2.msra.mxu0 0.0
        %1072 = vmatprep.subr.mxu0 0.0
        %1073 = vmatpush2.msra.mxu0 0.0
        %1074 = vmatprep.subr.mxu0 0.0
        %1075 = vmatpush2.msra.mxu0 0.0
        %1076 = vmatprep.subr.mxu0 0.0
        %1077 = vmatpush2.msra.mxu0 0.0
        %1078 = vmatprep.subr.mxu0 0.0
        %1079 = vmatpush2.msra.mxu0 0.0
        %1080 = vmatprep.subr.mxu0 0.0
        %1081 = vmatpush2.msra.mxu0 0.0
        %1082 = vmatprep.subr.mxu0 0.0
        %1083 = vmatpush2.msra.mxu0 0.0
        %1084 = vmatprep.subr.mxu0 0.0
        %1085 = vmatpush2.msra.mxu0 0.0
        %1086 = vmatprep.subr.mxu0 0.0
        %1087 = vmatpush2.msra.mxu0 0.0
        %1088 = vmatprep.subr.mxu0 0.0
        %1089 = vmatpush2.msra.mxu0 0.0
        %1090 = vmatprep.subr.mxu0 0.0
        %1091 = vmatpush2.msra.mxu0 0.0
        %1092 = vmatprep.subr.mxu0 0.0
        %1093 = vmatpush2.msra.mxu0 0.0
        %1094 = vmatprep.subr.mxu0 0.0
        %1095 = vmatpush2.msra.mxu0 0.0
        %1096 = vmatprep.subr.mxu0 0.0
        %1097 = vmatpush2.msra.mxu0 0.0
        %1098 = vmatprep.mubr.f32.mxu0 0.0
        %v1099 = vand.u32 %v717, 4294901760
        %1100 = vmatmul.mubr.f32.gmra.mxu0 %v1099
        %v1101 = vpop.f32.mrf.mxu0
        %v1102 = vadd.f32 %v1025, %v1101
        %v1103 = vpop.f32.mrf.mxu0
        %1104 = vdwg.mxu0
        %1105 = vmatprep.subr.mxu0 0.0
        %1106 = vmatpush1.msra.mxu0 0.0
        %1107 = vmatprep.subr.mxu0 0.0
        %1108 = vmatpush1.msra.mxu0 0.0
        %1109 = vmatprep.subr.mxu0 0.0
        %1110 = vmatpush1.msra.mxu0 0.0
        %1111 = vmatprep.subr.mxu0 0.0
        %1112 = vmatpush1.msra.mxu0 0.0
        %1113 = vmatprep.subr.mxu0 0.0
        %1114 = vmatpush1.msra.mxu0 0.0
        %1115 = vmatprep.subr.mxu0 0.0
        %1116 = vmatpush1.msra.mxu0 0.0
        %1117 = vmatprep.subr.mxu0 0.0
        %1118 = vmatpush1.msra.mxu0 0.0
        %1119 = vmatprep.subr.mxu0 0.0
        %1120 = vmatpush1.msra.mxu0 0.0
        %1121 = vmatprep.subr.mxu0 0.0
        %1122 = vmatpush1.msra.mxu0 0.0
        %1123 = vmatprep.subr.mxu0 0.0
        %1124 = vmatpush1.msra.mxu0 0.0
        %1125 = vmatprep.subr.mxu0 0.0
        %1126 = vmatpush1.msra.mxu0 0.0
        %1127 = vmatprep.subr.mxu0 0.0
        %1128 = vmatpush1.msra.mxu0 0.0
        %1129 = vmatprep.subr.mxu0 0.0
        %1130 = vmatpush1.msra.mxu0 0.0
        %1131 = vmatprep.subr.mxu0 0.0
        %1132 = vmatpush1.msra.mxu0 0.0
        %1133 = vmatprep.subr.mxu0 0.0
        %v1134 = vand.u32 %v714, 4294901760
        %1135 = vmatpush1.msra.mxu0 %v1134
        %1136 = vmatprep.subr.mxu0 0.0
        %v1137 = vand.u32 %v713, 4294901760
        %1138 = vmatpush1.msra.mxu0 %v1137
        %1139 = vmatprep.subr.mxu0 0.0
        %1140 = vmatpush2.msra.mxu0 0.0
        %1141 = vmatprep.subr.mxu0 0.0
        %1142 = vmatpush2.msra.mxu0 0.0
        %1143 = vmatprep.subr.mxu0 0.0
        %1144 = vmatpush2.msra.mxu0 0.0
        %1145 = vmatprep.subr.mxu0 0.0
        %1146 = vmatpush2.msra.mxu0 0.0
        %1147 = vmatprep.subr.mxu0 0.0
        %1148 = vmatpush2.msra.mxu0 0.0
        %1149 = vmatprep.subr.mxu0 0.0
        %1150 = vmatpush2.msra.mxu0 0.0
        %1151 = vmatprep.subr.mxu0 0.0
        %1152 = vmatpush2.msra.mxu0 0.0
        %1153 = vmatprep.subr.mxu0 0.0
        %1154 = vmatpush2.msra.mxu0 0.0
        %1155 = vmatprep.subr.mxu0 0.0
        %1156 = vmatpush2.msra.mxu0 0.0
        %1157 = vmatprep.subr.mxu0 0.0
        %1158 = vmatpush2.msra.mxu0 0.0
        %1159 = vmatprep.subr.mxu0 0.0
        %1160 = vmatpush2.msra.mxu0 0.0
        %1161 = vmatprep.subr.mxu0 0.0
        %1162 = vmatpush2.msra.mxu0 0.0
        %1163 = vmatprep.subr.mxu0 0.0
        %1164 = vmatpush2.msra.mxu0 0.0
        %1165 = vmatprep.subr.mxu0 0.0
        %1166 = vmatpush2.msra.mxu0 0.0
        %1167 = vmatprep.subr.mxu0 0.0
        %1168 = vmatpush2.msra.mxu0 0.0
        %1169 = vmatprep.subr.mxu0 0.0
        %1170 = vmatpush2.msra.mxu0 0.0
        %1171 = vmatprep.mubr.f32.mxu0 0.0
        %v1172 = vand.u32 %v717, 4294901760
        %1173 = vmatmul.mubr.f32.gmra.mxu0 %v1172
        %v1174 = vpop.f32.mrf.mxu0
        %v1175 = vadd.f32 %v1102, %v1174
        %v1176 = vpop.f32.mrf.mxu0
        %1177 = vdwg.mxu0
        %1178 = vmatprep.subr.mxu0 0.0
        %1179 = vmatpush1.msra.mxu0 0.0
        %1180 = vmatprep.subr.mxu0 0.0
        %1181 = vmatpush1.msra.mxu0 0.0
        %1182 = vmatprep.subr.mxu0 0.0
        %1183 = vmatpush1.msra.mxu0 0.0
        %1184 = vmatprep.subr.mxu0 0.0
        %1185 = vmatpush1.msra.mxu0 0.0
        %1186 = vmatprep.subr.mxu0 0.0
        %1187 = vmatpush1.msra.mxu0 0.0
        %1188 = vmatprep.subr.mxu0 0.0
        %1189 = vmatpush1.msra.mxu0 0.0
        %1190 = vmatprep.subr.mxu0 0.0
        %1191 = vmatpush1.msra.mxu0 0.0
        %1192 = vmatprep.subr.mxu0 0.0
        %1193 = vmatpush1.msra.mxu0 0.0
        %1194 = vmatprep.subr.mxu0 0.0
        %1195 = vmatpush1.msra.mxu0 0.0
        %1196 = vmatprep.subr.mxu0 0.0
        %1197 = vmatpush1.msra.mxu0 0.0
        %1198 = vmatprep.subr.mxu0 0.0
        %1199 = vmatpush1.msra.mxu0 0.0
        %1200 = vmatprep.subr.mxu0 0.0
        %1201 = vmatpush1.msra.mxu0 0.0
        %1202 = vmatprep.subr.mxu0 0.0
        %1203 = vmatpush1.msra.mxu0 0.0
        %1204 = vmatprep.subr.mxu0 0.0
        %1205 = vmatpush1.msra.mxu0 0.0
        %1206 = vmatprep.subr.mxu0 0.0
        %v1207 = vand.u32 %v702, 4294901760
        %1208 = vmatpush1.msra.mxu0 %v1207
        %1209 = vmatprep.subr.mxu0 0.0
        %v1210 = vand.u32 %v701, 4294901760
        %1211 = vmatpush1.msra.mxu0 %v1210
        %1212 = vmatprep.subr.mxu0 0.0
        %1213 = vmatpush2.msra.mxu0 0.0
        %1214 = vmatprep.subr.mxu0 0.0
        %1215 = vmatpush2.msra.mxu0 0.0
        %1216 = vmatprep.subr.mxu0 0.0
        %1217 = vmatpush2.msra.mxu0 0.0
        %1218 = vmatprep.subr.mxu0 0.0
        %1219 = vmatpush2.msra.mxu0 0.0
        %1220 = vmatprep.subr.mxu0 0.0
        %1221 = vmatpush2.msra.mxu0 0.0
        %1222 = vmatprep.subr.mxu0 0.0
        %1223 = vmatpush2.msra.mxu0 0.0
        %1224 = vmatprep.subr.mxu0 0.0
        %1225 = vmatpush2.msra.mxu0 0.0
        %1226 = vmatprep.subr.mxu0 0.0
        %1227 = vmatpush2.msra.mxu0 0.0
        %1228 = vmatprep.subr.mxu0 0.0
        %1229 = vmatpush2.msra.mxu0 0.0
        %1230 = vmatprep.subr.mxu0 0.0
        %1231 = vmatpush2.msra.mxu0 0.0
        %1232 = vmatprep.subr.mxu0 0.0
        %1233 = vmatpush2.msra.mxu0 0.0
        %1234 = vmatprep.subr.mxu0 0.0
        %1235 = vmatpush2.msra.mxu0 0.0
        %1236 = vmatprep.subr.mxu0 0.0
        %1237 = vmatpush2.msra.mxu0 0.0
        %1238 = vmatprep.subr.mxu0 0.0
        %1239 = vmatpush2.msra.mxu0 0.0
        %1240 = vmatprep.subr.mxu0 0.0
        %1241 = vmatpush2.msra.mxu0 0.0
        %1242 = vmatprep.subr.mxu0 0.0
        %1243 = vmatpush2.msra.mxu0 0.0
        %1244 = vmatprep.mubr.f32.mxu0 0.0
        %v1245 = vand.u32 %v717, 4294901760
        %v1246 = vsub.f32 %v717, %v1245
        %v1247 = vand.u32 %v1246, 4294901760
        %v1248 = vsub.f32 %v1246, %v1247
        %v1249 = vand.u32 %v1248, 4294901760
        %1250 = vmatmul.mubr.f32.gmra.mxu0 %v1249
        %v1251 = vpop.f32.mrf.mxu0
        %v1252 = vadd.f32 0.0, %v1251
        %v1253 = vpop.f32.mrf.mxu0
        %1254 = vdwg.mxu0
        %1255 = vmatprep.subr.mxu0 0.0
        %1256 = vmatpush1.msra.mxu0 0.0
        %1257 = vmatprep.subr.mxu0 0.0
        %1258 = vmatpush1.msra.mxu0 0.0
        %1259 = vmatprep.subr.mxu0 0.0
        %1260 = vmatpush1.msra.mxu0 0.0
        %1261 = vmatprep.subr.mxu0 0.0
        %1262 = vmatpush1.msra.mxu0 0.0
        %1263 = vmatprep.subr.mxu0 0.0
        %1264 = vmatpush1.msra.mxu0 0.0
        %1265 = vmatprep.subr.mxu0 0.0
        %1266 = vmatpush1.msra.mxu0 0.0
        %1267 = vmatprep.subr.mxu0 0.0
        %1268 = vmatpush1.msra.mxu0 0.0
        %1269 = vmatprep.subr.mxu0 0.0
        %1270 = vmatpush1.msra.mxu0 0.0
        %1271 = vmatprep.subr.mxu0 0.0
        %1272 = vmatpush1.msra.mxu0 0.0
        %1273 = vmatprep.subr.mxu0 0.0
        %1274 = vmatpush1.msra.mxu0 0.0
        %1275 = vmatprep.subr.mxu0 0.0
        %1276 = vmatpush1.msra.mxu0 0.0
        %1277 = vmatprep.subr.mxu0 0.0
        %1278 = vmatpush1.msra.mxu0 0.0
        %1279 = vmatprep.subr.mxu0 0.0
        %1280 = vmatpush1.msra.mxu0 0.0
        %1281 = vmatprep.subr.mxu0 0.0
        %1282 = vmatpush1.msra.mxu0 0.0
        %1283 = vmatprep.subr.mxu0 0.0
        %v1284 = vand.u32 %v702, 4294901760
        %v1285 = vsub.f32 %v702, %v1284
        %v1286 = vand.u32 %v1285, 4294901760
        %v1287 = vsub.f32 %v1285, %v1286
        %v1288 = vand.u32 %v1287, 4294901760
        %1289 = vmatpush1.msra.mxu0 %v1288
        %1290 = vmatprep.subr.mxu0 0.0
        %v1291 = vand.u32 %v701, 4294901760
        %v1292 = vsub.f32 %v701, %v1291
        %v1293 = vand.u32 %v1292, 4294901760
        %v1294 = vsub.f32 %v1292, %v1293
        %v1295 = vand.u32 %v1294, 4294901760
        %1296 = vmatpush1.msra.mxu0 %v1295
        %1297 = vmatprep.subr.mxu0 0.0
        %1298 = vmatpush2.msra.mxu0 0.0
        %1299 = vmatprep.subr.mxu0 0.0
        %1300 = vmatpush2.msra.mxu0 0.0
        %1301 = vmatprep.subr.mxu0 0.0
        %1302 = vmatpush2.msra.mxu0 0.0
        %1303 = vmatprep.subr.mxu0 0.0
        %1304 = vmatpush2.msra.mxu0 0.0
        %1305 = vmatprep.subr.mxu0 0.0
        %1306 = vmatpush2.msra.mxu0 0.0
        %1307 = vmatprep.subr.mxu0 0.0
        %1308 = vmatpush2.msra.mxu0 0.0
        %1309 = vmatprep.subr.mxu0 0.0
        %1310 = vmatpush2.msra.mxu0 0.0
        %1311 = vmatprep.subr.mxu0 0.0
        %1312 = vmatpush2.msra.mxu0 0.0
        %1313 = vmatprep.subr.mxu0 0.0
        %1314 = vmatpush2.msra.mxu0 0.0
        %1315 = vmatprep.subr.mxu0 0.0
        %1316 = vmatpush2.msra.mxu0 0.0
        %1317 = vmatprep.subr.mxu0 0.0
        %1318 = vmatpush2.msra.mxu0 0.0
        %1319 = vmatprep.subr.mxu0 0.0
        %1320 = vmatpush2.msra.mxu0 0.0
        %1321 = vmatprep.subr.mxu0 0.0
        %1322 = vmatpush2.msra.mxu0 0.0
        %1323 = vmatprep.subr.mxu0 0.0
        %1324 = vmatpush2.msra.mxu0 0.0
        %1325 = vmatprep.subr.mxu0 0.0
        %1326 = vmatpush2.msra.mxu0 0.0
        %1327 = vmatprep.subr.mxu0 0.0
        %1328 = vmatpush2.msra.mxu0 0.0
        %1329 = vmatprep.mubr.f32.mxu0 0.0
        %v1330 = vand.u32 %v717, 4294901760
        %1331 = vmatmul.mubr.f32.gmra.mxu0 %v1330
        %v1332 = vpop.f32.mrf.mxu0
        %v1333 = vadd.f32 %v1252, %v1332
        %v1334 = vpop.f32.mrf.mxu0
        %1335 = vdwg.mxu0
        %1336 = vmatprep.subr.mxu0 0.0
        %1337 = vmatpush1.msra.mxu0 0.0
        %1338 = vmatprep.subr.mxu0 0.0
        %1339 = vmatpush1.msra.mxu0 0.0
        %1340 = vmatprep.subr.mxu0 0.0
        %1341 = vmatpush1.msra.mxu0 0.0
        %1342 = vmatprep.subr.mxu0 0.0
        %1343 = vmatpush1.msra.mxu0 0.0
        %1344 = vmatprep.subr.mxu0 0.0
        %1345 = vmatpush1.msra.mxu0 0.0
        %1346 = vmatprep.subr.mxu0 0.0
        %1347 = vmatpush1.msra.mxu0 0.0
        %1348 = vmatprep.subr.mxu0 0.0
        %1349 = vmatpush1.msra.mxu0 0.0
        %1350 = vmatprep.subr.mxu0 0.0
        %1351 = vmatpush1.msra.mxu0 0.0
        %1352 = vmatprep.subr.mxu0 0.0
        %1353 = vmatpush1.msra.mxu0 0.0
        %1354 = vmatprep.subr.mxu0 0.0
        %1355 = vmatpush1.msra.mxu0 0.0
        %1356 = vmatprep.subr.mxu0 0.0
        %1357 = vmatpush1.msra.mxu0 0.0
        %1358 = vmatprep.subr.mxu0 0.0
        %1359 = vmatpush1.msra.mxu0 0.0
        %1360 = vmatprep.subr.mxu0 0.0
        %1361 = vmatpush1.msra.mxu0 0.0
        %1362 = vmatprep.subr.mxu0 0.0
        %1363 = vmatpush1.msra.mxu0 0.0
        %1364 = vmatprep.subr.mxu0 0.0
        %v1365 = vand.u32 %v702, 4294901760
        %v1366 = vsub.f32 %v702, %v1365
        %1367 = vmatpush1.msra.mxu0 %v1366
        %1368 = vmatprep.subr.mxu0 0.0
        %v1369 = vand.u32 %v701, 4294901760
        %v1370 = vsub.f32 %v701, %v1369
        %1371 = vmatpush1.msra.mxu0 %v1370
        %1372 = vmatprep.subr.mxu0 0.0
        %1373 = vmatpush2.msra.mxu0 0.0
        %1374 = vmatprep.subr.mxu0 0.0
        %1375 = vmatpush2.msra.mxu0 0.0
        %1376 = vmatprep.subr.mxu0 0.0
        %1377 = vmatpush2.msra.mxu0 0.0
        %1378 = vmatprep.subr.mxu0 0.0
        %1379 = vmatpush2.msra.mxu0 0.0
        %1380 = vmatprep.subr.mxu0 0.0
        %1381 = vmatpush2.msra.mxu0 0.0
        %1382 = vmatprep.subr.mxu0 0.0
        %1383 = vmatpush2.msra.mxu0 0.0
        %1384 = vmatprep.subr.mxu0 0.0
        %1385 = vmatpush2.msra.mxu0 0.0
        %1386 = vmatprep.subr.mxu0 0.0
        %1387 = vmatpush2.msra.mxu0 0.0
        %1388 = vmatprep.subr.mxu0 0.0
        %1389 = vmatpush2.msra.mxu0 0.0
        %1390 = vmatprep.subr.mxu0 0.0
        %1391 = vmatpush2.msra.mxu0 0.0
        %1392 = vmatprep.subr.mxu0 0.0
        %1393 = vmatpush2.msra.mxu0 0.0
        %1394 = vmatprep.subr.mxu0 0.0
        %1395 = vmatpush2.msra.mxu0 0.0
        %1396 = vmatprep.subr.mxu0 0.0
        %1397 = vmatpush2.msra.mxu0 0.0
        %1398 = vmatprep.subr.mxu0 0.0
        %1399 = vmatpush2.msra.mxu0 0.0
        %1400 = vmatprep.subr.mxu0 0.0
        %1401 = vmatpush2.msra.mxu0 0.0
        %1402 = vmatprep.subr.mxu0 0.0
        %1403 = vmatpush2.msra.mxu0 0.0
        %1404 = vmatprep.mubr.f32.mxu0 0.0
        %v1405 = vand.u32 %v717, 4294901760
        %v1406 = vsub.f32 %v717, %v1405
        %1407 = vmatmul.mubr.f32.gmra.mxu0 %v1406
        %v1408 = vpop.f32.mrf.mxu0
        %v1409 = vadd.f32 %v1333, %v1408
        %v1410 = vpop.f32.mrf.mxu0
        %1411 = vdwg.mxu0
        %1412 = vmatprep.subr.mxu0 0.0
        %1413 = vmatpush1.msra.mxu0 0.0
        %1414 = vmatprep.subr.mxu0 0.0
        %1415 = vmatpush1.msra.mxu0 0.0
        %1416 = vmatprep.subr.mxu0 0.0
        %1417 = vmatpush1.msra.mxu0 0.0
        %1418 = vmatprep.subr.mxu0 0.0
        %1419 = vmatpush1.msra.mxu0 0.0
        %1420 = vmatprep.subr.mxu0 0.0
        %1421 = vmatpush1.msra.mxu0 0.0
        %1422 = vmatprep.subr.mxu0 0.0
        %1423 = vmatpush1.msra.mxu0 0.0
        %1424 = vmatprep.subr.mxu0 0.0
        %1425 = vmatpush1.msra.mxu0 0.0
        %1426 = vmatprep.subr.mxu0 0.0
        %1427 = vmatpush1.msra.mxu0 0.0
        %1428 = vmatprep.subr.mxu0 0.0
        %1429 = vmatpush1.msra.mxu0 0.0
        %1430 = vmatprep.subr.mxu0 0.0
        %1431 = vmatpush1.msra.mxu0 0.0
        %1432 = vmatprep.subr.mxu0 0.0
        %1433 = vmatpush1.msra.mxu0 0.0
        %1434 = vmatprep.subr.mxu0 0.0
        %1435 = vmatpush1.msra.mxu0 0.0
        %1436 = vmatprep.subr.mxu0 0.0
        %1437 = vmatpush1.msra.mxu0 0.0
        %1438 = vmatprep.subr.mxu0 0.0
        %1439 = vmatpush1.msra.mxu0 0.0
        %1440 = vmatprep.subr.mxu0 0.0
        %v1441 = vand.u32 %v702, 4294901760
        %1442 = vmatpush1.msra.mxu0 %v1441
        %1443 = vmatprep.subr.mxu0 0.0
        %v1444 = vand.u32 %v701, 4294901760
        %1445 = vmatpush1.msra.mxu0 %v1444
        %1446 = vmatprep.subr.mxu0 0.0
        %1447 = vmatpush2.msra.mxu0 0.0
        %1448 = vmatprep.subr.mxu0 0.0
        %1449 = vmatpush2.msra.mxu0 0.0
        %1450 = vmatprep.subr.mxu0 0.0
        %1451 = vmatpush2.msra.mxu0 0.0
        %1452 = vmatprep.subr.mxu0 0.0
        %1453 = vmatpush2.msra.mxu0 0.0
        %1454 = vmatprep.subr.mxu0 0.0
        %1455 = vmatpush2.msra.mxu0 0.0
        %1456 = vmatprep.subr.mxu0 0.0
        %1457 = vmatpush2.msra.mxu0 0.0
        %1458 = vmatprep.subr.mxu0 0.0
        %1459 = vmatpush2.msra.mxu0 0.0
        %1460 = vmatprep.subr.mxu0 0.0
        %1461 = vmatpush2.msra.mxu0 0.0
        %1462 = vmatprep.subr.mxu0 0.0
        %1463 = vmatpush2.msra.mxu0 0.0
        %1464 = vmatprep.subr.mxu0 0.0
        %1465 = vmatpush2.msra.mxu0 0.0
        %1466 = vmatprep.subr.mxu0 0.0
        %1467 = vmatpush2.msra.mxu0 0.0
        %1468 = vmatprep.subr.mxu0 0.0
        %1469 = vmatpush2.msra.mxu0 0.0
        %1470 = vmatprep.subr.mxu0 0.0
        %1471 = vmatpush2.msra.mxu0 0.0
        %1472 = vmatprep.subr.mxu0 0.0
        %1473 = vmatpush2.msra.mxu0 0.0
        %1474 = vmatprep.subr.mxu0 0.0
        %1475 = vmatpush2.msra.mxu0 0.0
        %1476 = vmatprep.subr.mxu0 0.0
        %1477 = vmatpush2.msra.mxu0 0.0
        %1478 = vmatprep.mubr.f32.mxu0 0.0
        %v1479 = vand.u32 %v717, 4294901760
        %v1480 = vsub.f32 %v717, %v1479
        %v1481 = vand.u32 %v1480, 4294901760
        %1482 = vmatmul.mubr.f32.gmra.mxu0 %v1481
        %v1483 = vpop.f32.mrf.mxu0
        %v1484 = vadd.f32 %v1409, %v1483
        %v1485 = vpop.f32.mrf.mxu0
        %1486 = vdwg.mxu0
        %1487 = vmatprep.subr.mxu0 0.0
        %1488 = vmatpush1.msra.mxu0 0.0
        %1489 = vmatprep.subr.mxu0 0.0
        %1490 = vmatpush1.msra.mxu0 0.0
        %1491 = vmatprep.subr.mxu0 0.0
        %1492 = vmatpush1.msra.mxu0 0.0
        %1493 = vmatprep.subr.mxu0 0.0
        %1494 = vmatpush1.msra.mxu0 0.0
        %1495 = vmatprep.subr.mxu0 0.0
        %1496 = vmatpush1.msra.mxu0 0.0
        %1497 = vmatprep.subr.mxu0 0.0
        %1498 = vmatpush1.msra.mxu0 0.0
        %1499 = vmatprep.subr.mxu0 0.0
        %1500 = vmatpush1.msra.mxu0 0.0
        %1501 = vmatprep.subr.mxu0 0.0
        %1502 = vmatpush1.msra.mxu0 0.0
        %1503 = vmatprep.subr.mxu0 0.0
        %1504 = vmatpush1.msra.mxu0 0.0
        %1505 = vmatprep.subr.mxu0 0.0
        %1506 = vmatpush1.msra.mxu0 0.0
        %1507 = vmatprep.subr.mxu0 0.0
        %1508 = vmatpush1.msra.mxu0 0.0
        %1509 = vmatprep.subr.mxu0 0.0
        %1510 = vmatpush1.msra.mxu0 0.0
        %1511 = vmatprep.subr.mxu0 0.0
        %1512 = vmatpush1.msra.mxu0 0.0
        %1513 = vmatprep.subr.mxu0 0.0
        %1514 = vmatpush1.msra.mxu0 0.0
        %1515 = vmatprep.subr.mxu0 0.0
        %v1516 = vand.u32 %v702, 4294901760
        %v1517 = vsub.f32 %v702, %v1516
        %v1518 = vand.u32 %v1517, 4294901760
        %1519 = vmatpush1.msra.mxu0 %v1518
        %1520 = vmatprep.subr.mxu0 0.0
        %v1521 = vand.u32 %v701, 4294901760
        %v1522 = vsub.f32 %v701, %v1521
        %v1523 = vand.u32 %v1522, 4294901760
        %1524 = vmatpush1.msra.mxu0 %v1523
        %1525 = vmatprep.subr.mxu0 0.0
        %1526 = vmatpush2.msra.mxu0 0.0
        %1527 = vmatprep.subr.mxu0 0.0
        %1528 = vmatpush2.msra.mxu0 0.0
        %1529 = vmatprep.subr.mxu0 0.0
        %1530 = vmatpush2.msra.mxu0 0.0
        %1531 = vmatprep.subr.mxu0 0.0
        %1532 = vmatpush2.msra.mxu0 0.0
        %1533 = vmatprep.subr.mxu0 0.0
        %1534 = vmatpush2.msra.mxu0 0.0
        %1535 = vmatprep.subr.mxu0 0.0
        %1536 = vmatpush2.msra.mxu0 0.0
        %1537 = vmatprep.subr.mxu0 0.0
        %1538 = vmatpush2.msra.mxu0 0.0
        %1539 = vmatprep.subr.mxu0 0.0
        %1540 = vmatpush2.msra.mxu0 0.0
        %1541 = vmatprep.subr.mxu0 0.0
        %1542 = vmatpush2.msra.mxu0 0.0
        %1543 = vmatprep.subr.mxu0 0.0
        %1544 = vmatpush2.msra.mxu0 0.0
        %1545 = vmatprep.subr.mxu0 0.0
        %1546 = vmatpush2.msra.mxu0 0.0
        %1547 = vmatprep.subr.mxu0 0.0
        %1548 = vmatpush2.msra.mxu0 0.0
        %1549 = vmatprep.subr.mxu0 0.0
        %1550 = vmatpush2.msra.mxu0 0.0
        %1551 = vmatprep.subr.mxu0 0.0
        %1552 = vmatpush2.msra.mxu0 0.0
        %1553 = vmatprep.subr.mxu0 0.0
        %1554 = vmatpush2.msra.mxu0 0.0
        %1555 = vmatprep.subr.mxu0 0.0
        %1556 = vmatpush2.msra.mxu0 0.0
        %1557 = vmatprep.mubr.f32.mxu0 0.0
        %v1558 = vand.u32 %v717, 4294901760
        %1559 = vmatmul.mubr.f32.gmra.mxu0 %v1558
        %v1560 = vpop.f32.mrf.mxu0
        %v1561 = vadd.f32 %v1484, %v1560
        %v1562 = vpop.f32.mrf.mxu0
        %1563 = vdwg.mxu0
        %1564 = vmatprep.subr.mxu0 0.0
        %1565 = vmatpush1.msra.mxu0 0.0
        %1566 = vmatprep.subr.mxu0 0.0
        %1567 = vmatpush1.msra.mxu0 0.0
        %1568 = vmatprep.subr.mxu0 0.0
        %1569 = vmatpush1.msra.mxu0 0.0
        %1570 = vmatprep.subr.mxu0 0.0
        %1571 = vmatpush1.msra.mxu0 0.0
        %1572 = vmatprep.subr.mxu0 0.0
        %1573 = vmatpush1.msra.mxu0 0.0
        %1574 = vmatprep.subr.mxu0 0.0
        %1575 = vmatpush1.msra.mxu0 0.0
        %1576 = vmatprep.subr.mxu0 0.0
        %1577 = vmatpush1.msra.mxu0 0.0
        %1578 = vmatprep.subr.mxu0 0.0
        %1579 = vmatpush1.msra.mxu0 0.0
        %1580 = vmatprep.subr.mxu0 0.0
        %1581 = vmatpush1.msra.mxu0 0.0
        %1582 = vmatprep.subr.mxu0 0.0
        %1583 = vmatpush1.msra.mxu0 0.0
        %1584 = vmatprep.subr.mxu0 0.0
        %1585 = vmatpush1.msra.mxu0 0.0
        %1586 = vmatprep.subr.mxu0 0.0
        %1587 = vmatpush1.msra.mxu0 0.0
        %1588 = vmatprep.subr.mxu0 0.0
        %1589 = vmatpush1.msra.mxu0 0.0
        %1590 = vmatprep.subr.mxu0 0.0
        %1591 = vmatpush1.msra.mxu0 0.0
        %1592 = vmatprep.subr.mxu0 0.0
        %v1593 = vand.u32 %v702, 4294901760
        %1594 = vmatpush1.msra.mxu0 %v1593
        %1595 = vmatprep.subr.mxu0 0.0
        %v1596 = vand.u32 %v701, 4294901760
        %1597 = vmatpush1.msra.mxu0 %v1596
        %1598 = vmatprep.subr.mxu0 0.0
        %1599 = vmatpush2.msra.mxu0 0.0
        %1600 = vmatprep.subr.mxu0 0.0
        %1601 = vmatpush2.msra.mxu0 0.0
        %1602 = vmatprep.subr.mxu0 0.0
        %1603 = vmatpush2.msra.mxu0 0.0
        %1604 = vmatprep.subr.mxu0 0.0
        %1605 = vmatpush2.msra.mxu0 0.0
        %1606 = vmatprep.subr.mxu0 0.0
        %1607 = vmatpush2.msra.mxu0 0.0
        %1608 = vmatprep.subr.mxu0 0.0
        %1609 = vmatpush2.msra.mxu0 0.0
        %1610 = vmatprep.subr.mxu0 0.0
        %1611 = vmatpush2.msra.mxu0 0.0
        %1612 = vmatprep.subr.mxu0 0.0
        %1613 = vmatpush2.msra.mxu0 0.0
        %1614 = vmatprep.subr.mxu0 0.0
        %1615 = vmatpush2.msra.mxu0 0.0
        %1616 = vmatprep.subr.mxu0 0.0
        %1617 = vmatpush2.msra.mxu0 0.0
        %1618 = vmatprep.subr.mxu0 0.0
        %1619 = vmatpush2.msra.mxu0 0.0
        %1620 = vmatprep.subr.mxu0 0.0
        %1621 = vmatpush2.msra.mxu0 0.0
        %1622 = vmatprep.subr.mxu0 0.0
        %1623 = vmatpush2.msra.mxu0 0.0
        %1624 = vmatprep.subr.mxu0 0.0
        %1625 = vmatpush2.msra.mxu0 0.0
        %1626 = vmatprep.subr.mxu0 0.0
        %1627 = vmatpush2.msra.mxu0 0.0
        %1628 = vmatprep.subr.mxu0 0.0
        %1629 = vmatpush2.msra.mxu0 0.0
        %1630 = vmatprep.mubr.f32.mxu0 0.0
        %v1631 = vand.u32 %v717, 4294901760
        %1632 = vmatmul.mubr.f32.gmra.mxu0 %v1631
        %v1633 = vpop.f32.mrf.mxu0
        %v1634 = vadd.f32 %v1561, %v1633
        %v1635 = vpop.f32.mrf.mxu0
        %1636 = vdwg.mxu0
        %vm1637 = vcmp.gt.f32.partialorder %v1634, 0.0
        %v1639 = vrot.slane %v1634, 4
        %v1642 = vrot.slane %v1175, 4
        %v1644 = vsel %vm1637, %v1639, %v1642
        %v1645 = vsel %vm1637, %v1634, %v1175
        %v1646 = vrcp.pop %v1645
        %v1647 = vmul.f32 %v1645, %v1646
        %v1648 = vsub.f32 2.0, %v1647
        %v1649 = vmul.f32 %v1646, %v1648
        %v1650 = vmul.f32 %v1644, %v1649
        %1651 = vst [vmem:[%s148 - $0x4] sm:$0xf0] %v1650
      $region40: #{idw_warp.1} parent=31 // pred_fallthru
        _
      %p1652 = scmp.lt.s32.totalorder %s14, 1
      %s1653 = scalar_select %p1652, %s14, 1
      %s1654 = smul.addr %s1653, 4
      %s1655 = scalar_lea.vmem %s3, %s1654
      // Predicated region
      $region41: #{idw_warp.1} parent=31 // pred_check
        %p1656 = pneg %p95
      $region42: #{idw_warp.1} parent=31 // pred_check_branch
        %1658 = sbr.rel (%p1656) target = $region44
      $region43: #{idw_warp.1} parent=31 // pred_region
        _
      $region44: #{idw_warp.1} parent=31 // pred_fallthru
        _
    $region32: #{idw_warp.1} parent=5 // pred_fallthru
      _
    %p1659 = scmp.le.s32.totalorder 2, %s9
    // Predicated region
    $region45: #{idw_warp.1} parent=5 // pred_check
      %p1660 = pneg %p1659
    $region46: #{idw_warp.1} parent=5 // pred_check_branch
      %1662 = sbr.rel (%p1660) target = $region48
    $region47: #{idw_warp.1} parent=5 // pred_region
      %s1663 = ssub.s32 %s9, 2
      // Predicated region
      $region49: #{idw_warp.1} parent=47 // pred_check
        %p1664 = pneg %p101
      $region50: #{idw_warp.1} parent=47 // pred_check_branch
        %1666 = sbr.rel (%p1664) target = $region52
      $region51: #{idw_warp.1} parent=47 // pred_region
        %p1667 = scmp.lt.s32.totalorder %s15, 1
        %s1668 = scalar_select %p1667, %s15, 1
        %s1669 = smul.addr %s1668, 4
        %s1670 = scalar_lea.vmem %s3, %s1669
      $region52: #{idw_warp.1} parent=47 // pred_fallthru
        _
    $region48: #{idw_warp.1} parent=5 // pred_fallthru
      _
  $region6: #{idw_warp.1} parent=0 // loop_footer
    %s13 = sadd.s32 1, %s9
  $region7: #{idw_warp.1} parent=0 // loop_footer_branch
    %8 = sbr.rel target = $region3
  $region8: #{idw_warp.1} parent=0 // loop_exit
    _

</llo_original>
